<compile_context>
chip_gen: v6e
topology: v6e:2x2x1
jax: 0.10.0
libtpu: 0.0.40
codegen_flags: <defaults>
</compile_context>

<pallas_src>
import functools

import jax
import jax.numpy as jnp
from jax import lax
from jax.experimental import pallas as pl
from jax.experimental.pallas import tpu as pltpu


def _ceil_to(a, b):
    return (a + b - 1) // b * b


def _vmem_limit_bytes():
    # Half of physical VMEM, capped at 64 MiB (v5e/v6e: 128 MiB -> 64 MiB,
    # v7x: 64 MiB -> 32 MiB).  Conservative fallback if the query is missing.
    try:
        cap = int(pltpu.get_tpu_info().vmem_capacity_bytes)
    except Exception:
        cap = 64 * 1024 * 1024
    return min(cap // 2, 64 * 1024 * 1024)


def _pick_ct(C, byte_cap, step_cap, shape_ok):
    """Largest divisor of C under the byte budget, preferring >= a few steps."""
    divs = [d for d in range(1, C + 1) if C % d == 0]
    for cands in (
        [d for d in divs if d <= byte_cap and d <= step_cap and shape_ok(d)],
        [d for d in divs if d <= byte_cap and shape_ok(d)],
        [d for d in divs if d <= byte_cap],
    ):
        if cands:
            return max(cands)
    return 1


# ---------------------------------------------------------------------------
# Lane-dense path (small feature maps): spatial plane on lanes, channels on
# sublanes; one (Ct, H*W) @ (H*W, Ho*Wo) MXU matmul per depthwise tap.
# ---------------------------------------------------------------------------
def _downblock_small_kernel(x_ref, w_ref, b_ref, s_ref, o_ref, *,
                            KK, Ct, HoWo, relu):
    # x_ref: (1, Ct, H*W)        input slab
    # w_ref: (1, KK, Ct, 1)      BN-folded taps, per channel (lane-broadcast)
    # b_ref: (1, Ct, 1)          folded BN bias
    # s_ref: (KK, H*W, Ho*Wo)    resident 0/1 spatial-gather matrices
    # o_ref: (1, Ct, Ho*Wo)      output slab
    x = x_ref[0]                                            # (Ct, H*W)
    acc = jnp.zeros((Ct, HoWo), jnp.float32)
    for t in range(KK):                                     # K*K = 9, unrolled
        xt = x * w_ref[0, t]                                # per-channel tap
        acc = acc + jnp.dot(xt, s_ref[t],
                            preferred_element_type=jnp.float32)
    y = acc + b_ref[0]
    if relu:
        y = jnp.maximum(y, 0.0)
    o_ref[0] = y.astype(o_ref.dtype)                        # one slab store


# ---------------------------------------------------------------------------
# General path (large feature maps): channels stacked along sublanes, W on
# lanes.  Requires k=3, s=2, p=1 and even H (wrapper pads odd H, equivalent).
# ---------------------------------------------------------------------------
def _downblock_general_kernel(x_ref, w_ref, s_ref, o_ref, *, K, Ho, Wo, relu):
    # x_ref: (1, 1, Ct*H, W)      channel-stacked input slab
    # w_ref: (1, Ct*Ho, K*K+1)    per-output-row taps (+ bias in last column)
    # s_ref: (K, W, Wo)           resident 0/1 column-select matrices
    # o_ref: (1, 1, Ct*Ho, Wo)    channel-stacked output slab
    cth, W = x_ref.shape[2], x_ref.shape[3]
    ctho = o_ref.shape[2]
    x = x_ref[0, 0]                                         # (Ct*H, W)
    wrows = w_ref[0]                                        # (Ct*Ho, K*K+1) f32

    # H even => per-channel offsets in the stacked row axis keep parity, so
    # stride-2 sublane slices select the kh taps for all channels at once.
    r1 = lax.slice(x, (0, 0), (cth, W), (2, 1))             # rows 2i   (kh=1)
    r2 = lax.slice(x, (1, 0), (cth, W), (2, 1))             # rows 2i+1 (kh=2)
    zrow = jnp.zeros((1, W), x.dtype)
    # kh=0 rows = kh=2 rows shifted down one output row; zero each channel's
    # first output row (top padding + kills cross-channel leakage).
    r0 = jnp.concatenate([zrow, lax.slice(r2, (0, 0), (ctho - 1, W))], axis=0)
    first = (lax.broadcasted_iota(jnp.int32, (ctho, W), 0) % Ho) == 0
    r0 = jnp.where(first, jnp.zeros_like(r0), r0)

    acc = jnp.zeros((ctho, Wo), jnp.float32)
    for kw in range(K):
        w0 = lax.slice(wrows, (0, 0 * K + kw), (ctho, 0 * K + kw + 1))
        w1 = lax.slice(wrows, (0, 1 * K + kw), (ctho, 1 * K + kw + 1))
        w2 = lax.slice(wrows, (0, 2 * K + kw), (ctho, 2 * K + kw + 1))
        u = r0 * w0 + r1 * w1 + r2 * w2                     # (Ct*Ho, W) f32
        acc = acc + jnp.dot(u, s_ref[kw],
                            preferred_element_type=jnp.float32)
    bias = lax.slice(wrows, (0, K * K), (ctho, K * K + 1))  # (Ct*Ho, 1)
    y = acc + bias
    if relu:
        y = jnp.maximum(y, 0.0)
    o_ref[0, 0] = y.astype(o_ref.dtype)                     # one slab store


# ---------------------------------------------------------------------------
# Wrapper
# ---------------------------------------------------------------------------
def downblock_forward(x, dw_weight, bn_gamma, bn_beta, bn_mean, bn_var, *,
                      kernel_size=3, stride=2, padding=1, relu=True, eps=1e-5,
                      small_select_budget=4 * 1024 * 1024):
    N, C, H, W = x.shape
    if W // stride == 1:                     # mirror the PyTorch early-return
        return x
    K = kernel_size
    Ho = (H + 2 * padding - K) // stride + 1
    Wo = (W + 2 * padding - K) // stride + 1
    f32 = jnp.float32

    # Fold inference BatchNorm: scale into the depthwise taps, bias separate.
    inv_std = 1.0 / jnp.sqrt(bn_var.astype(f32) + eps)
    scale = bn_gamma.astype(f32) * inv_std                              # (C,)
    bias = bn_beta.astype(f32) - bn_mean.astype(f32) * scale            # (C,)
    w_taps = (dw_weight[:, 0, :, :].astype(f32)
              * scale[:, None, None]).reshape(C, K * K)                 # (C,KK)

    isz = x.dtype.itemsize
    vmem_limit = _vmem_limit_bytes()
    steps_wanted = 8                      # keep pipeline / both v7x TCs busy
    flops = int(N * C * Ho * Wo * (2 * K * K + 3))

    sel_bytes = K * K * H * W * Ho * Wo * 4
    if sel_bytes <= small_select_budget:
        # -------- lane-dense path (covers the module's typical small maps) --
        HW, HoWo = H * W, Ho * Wo
        # S[kh*K+kw, hi*W+wi, i*Wo+j] = 1 iff hi == s*i + kh - p and
        # wi == s*j + kw - p  (zero padding handled by "no 1 in that column").
        hi = jnp.arange(HW, dtype=jnp.int32) // W
        wi = jnp.arange(HW, dtype=jnp.int32) % W
        oi = jnp.arange(HoWo, dtype=jnp.int32) // Wo
        oj = jnp.arange(HoWo, dtype=jnp.int32) % Wo
        khv = jnp.arange(K, dtype=jnp.int32)
        kwv = jnp.arange(K, dtype=jnp.int32)
        ch = hi[None, None, :, None] == (stride * oi[None, None, None, :]
                                         + khv[:, None, None, None] - padding)
        cw = wi[None, None, :, None] == (stride * oj[None, None, None, :]
                                         + kwv[None, :, None, None] - padding)
        sel = (ch & cw).astype(f32).reshape(K * K, HW, HoWo)

        # Channels per grid step from a dtype-accurate VMEM budget (in/out
        # blocks double-buffered + f32 temporaries + lane-padded taps).
        sel_vmem = K * K * _ceil_to(HW, 8) * _ceil_to(HoWo, 128) * 4
        usable = max(vmem_limit - sel_vmem - 4 * 1024 * 1024, 1024 * 1024)
        per_ch = (2 * (HW + HoWo) * isz          # double-buffered x / out
                  + 4 * (HW + HoWo)              # f32 tap-weighted temp + acc
                  + 2 * (K * K + 1) * 128 * 4)   # lane-padded taps + bias
        byte_cap = max(1, usable // per_ch)
        step_cap = max(1, (N * C) // steps_wanted)
        # (Ct, spatial) blocks need Ct % 8 == 0 or Ct == C (sublane rule).
        Ct = _pick_ct(C, byte_cap, step_cap, lambda d: d == C or d % 8 == 0)
        G = C // Ct

        x_in = x.reshape(N, C, HW)                                   # free
        w_in = w_taps.reshape(G, Ct, K * K).transpose(0, 2, 1)[..., None]
        b_in = bias.reshape(G, Ct, 1)

        kernel = functools.partial(_downblock_small_kernel, KK=K * K, Ct=Ct,
                                   HoWo=HoWo, relu=relu)
        bytes_accessed = int(N * C * (HW + HoWo) * isz + sel.size * 4
                             + w_in.size * 4 + b_in.size * 4)
        out = pl.pallas_call(
            kernel,
            out_shape=jax.ShapeDtypeStruct((N, C, HoWo), x.dtype),
            grid=(N, G),
            in_specs=[
                pl.BlockSpec((1, Ct, HW), lambda n, g: (n, g, 0)),
                pl.BlockSpec((1, K * K, Ct, 1), lambda n, g: (g, 0, 0, 0)),
                pl.BlockSpec((1, Ct, 1), lambda n, g: (g, 0, 0)),
                pl.BlockSpec((K * K, HW, HoWo), lambda n, g: (0, 0, 0)),
            ],
            out_specs=pl.BlockSpec((1, Ct, HoWo), lambda n, g: (n, g, 0)),
            compiler_params=pltpu.CompilerParams(
                dimension_semantics=("parallel", "parallel"),
                vmem_limit_bytes=vmem_limit),
            cost_estimate=pl.CostEstimate(flops=flops, transcendentals=0,
                                          bytes_accessed=bytes_accessed),
        )(x_in, w_in, b_in, sel)
        return out.reshape(N, C, Ho, Wo)

    # ---------------- general path (large feature maps) ---------------------
    if not (K == 3 and stride == 2 and padding == 1):
        # TODO(synk): generalize the stacked-row tap decomposition beyond the
        # module defaults (k=3, s=2, p=1); the small-map path already is.
        raise NotImplementedError(
            "Pallas Downblock general path supports k=3, s=2, p=1 only.")
    xg, Hp = x, H
    if H % 2 != 0:
        # One zero row at the bottom is exactly equivalent for k=3,s=2,p=1 and
        # keeps the stacked stride-2 row selection uniform across channels.
        xg = jnp.pad(x, ((0, 0), (0, 0), (0, 1), (0, 0)))
        Hp = H + 1
    KK1 = K * K + 1

    # (W, Wo) 0/1 column-select matrices (stride-2 subsample + W zero padding).
    c_idx = jnp.arange(W, dtype=jnp.int32)[None, :, None]
    j_idx = jnp.arange(Wo, dtype=jnp.int32)[None, None, :]
    k_idx = jnp.arange(K, dtype=jnp.int32)[:, None, None]
    col_sel = (c_idx == stride * j_idx + k_idx - padding).astype(f32)  # (K,W,Wo)

    usable = max(vmem_limit - 4 * 1024 * 1024, 1024 * 1024)
    per_ch = (2 * (Hp * W + Ho * Wo) * isz       # double-buffered in / out
              + Ho * W * (3 * isz + 4)           # r0/r1/r2 + f32 u
              + Ho * Wo * 4                      # f32 acc
              + 2 * Ho * _ceil_to(KK1, 128) * 4)  # lane-padded per-row taps
    byte_cap = max(1, usable // per_ch)
    step_cap = max(1, (N * C) // steps_wanted)
    Ct = _pick_ct(C, byte_cap, step_cap, lambda d: True)
    G = C // Ct

    x_in = xg.reshape(N, G, Ct * Hp, W)                               # free
    wb = jnp.concatenate([w_taps, bias[:, None]], axis=1)             # (C,KK+1)
    w_in = jnp.broadcast_to(wb.reshape(G, Ct, 1, KK1),
                            (G, Ct, Ho, KK1)).reshape(G, Ct * Ho, KK1)

    kernel = functools.partial(_downblock_general_kernel, K=K, Ho=Ho, Wo=Wo,
                               relu=relu)
    bytes_accessed = int(N * C * (Hp * W + Ho * Wo) * isz
                         + N * w_in.size * 4 + col_sel.size * 4)
    out = pl.pallas_call(
        kernel,
        out_shape=jax.ShapeDtypeStruct((N, G, Ct * Ho, Wo), x.dtype),
        grid=(N, G),
        in_specs=[
            pl.BlockSpec((1, 1, Ct * Hp, W), lambda n, g: (n, g, 0, 0)),
            pl.BlockSpec((1, Ct * Ho, KK1), lambda n, g: (g, 0, 0)),
            pl.BlockSpec((K, W, Wo), lambda n, g: (0, 0, 0)),
        ],
        out_specs=pl.BlockSpec((1, 1, Ct * Ho, Wo), lambda n, g: (n, g, 0, 0)),
        compiler_params=pltpu.CompilerParams(
            dimension_semantics=("parallel", "parallel"),
            vmem_limit_bytes=vmem_limit),
        cost_estimate=pl.CostEstimate(flops=flops, transcendentals=0,
                                      bytes_accessed=bytes_accessed),
    )(x_in, w_in, col_sel)
    return out.reshape(N, C, Ho, Wo)


# ---------------------------------------------------------------------------
# Pure-JAX reference (for the self-check)
# ---------------------------------------------------------------------------
def _reference_forward(x, w, gamma, beta, mean, var, *,
                       kernel_size=3, stride=2, padding=1, relu=True,
                       eps=1e-5):
    N, C, H, W = x.shape
    if W // stride == 1:
        return x
    y = lax.conv_general_dilated(
        x, w,
        window_strides=(stride, stride),
        padding=[(padding, padding), (padding, padding)],
        dimension_numbers=("NCHW", "OIHW", "NCHW"),
        feature_group_count=C,
    )
    scale = (gamma / jnp.sqrt(var + eps)).reshape(1, C, 1, 1)
    bias = (beta - mean * gamma / jnp.sqrt(var + eps)).reshape(1, C, 1, 1)
    y = y * scale + bias
    if relu:
        y = jnp.maximum(y, 0.0)
    return y


if __name__ == "__main__":
    key = jax.random.PRNGKey(0)
    N, C, H, W = 2, 4, 16, 16
    K = 3

    k0, k1, k2, k3, k4, k5 = jax.random.split(key, 6)
    x = jax.random.normal(k0, (N, C, H, W), dtype=jnp.float32)
    dw_weight = jax.random.normal(k1, (C, 1, K, K), dtype=jnp.float32) * 0.1
    bn_gamma = 1.0 + 0.1 * jax.random.normal(k2, (C,), dtype=jnp.float32)
    bn_beta = 0.1 * jax.random.normal(k3, (C,), dtype=jnp.float32)
    bn_mean = 0.05 * jax.random.normal(k4, (C,), dtype=jnp.float32)
    bn_var = jnp.abs(1.0 + 0.1 * jax.random.normal(k5, (C,), dtype=jnp.float32))

    out = downblock_forward(x, dw_weight, bn_gamma, bn_beta, bn_mean, bn_var)
    out = jax.block_until_ready(out)

    ref = _reference_forward(x, dw_weight, bn_gamma, bn_beta, bn_mean, bn_var)
    assert out.shape == (N, C, H // 2, W // 2)
    # Tolerance allows for possible bf16 MXU operand rounding in either path.
    assert jnp.allclose(out, ref, atol=1e-2, rtol=1e-2), (
        float(jnp.max(jnp.abs(out - ref))))

    print("KERNEL_OK")
</pallas_src>

<mosaic_0001>
module attributes {stable_mosaic.version = 11 : i64} {
  func.func @_downblock_small_kernel(%arg0: i32, %arg1: i32, %arg2: memref<1x4x256xf32, #tpu.memory_space<vmem>>, %arg3: memref<1x9x4x1xf32, #tpu.memory_space<vmem>>, %arg4: memref<1x4x1xf32, #tpu.memory_space<vmem>>, %arg5: memref<9x256x64xf32, #tpu.memory_space<vmem>>, %arg6: memref<1x4x64xf32, #tpu.memory_space<vmem>>) attributes {dimension_semantics = [#tpu.dimension_semantics<parallel>, #tpu.dimension_semantics<parallel>], iteration_bounds = array<i64: 2, 1>, scalar_prefetch = 0 : i64, scratch_operands = 0 : i64, tpu.core_type = #tpu.core_type<tc>, window_params = [{transform_indices = @transform_0, window_bounds = array<i64: 1, 4, 256>}, {transform_indices = @transform_1, window_bounds = array<i64: 1, 9, 4, 1>}, {transform_indices = @transform_2, window_bounds = array<i64: 1, 4, 1>}, {pipeline_mode = #tpu.pipeline_mode<synchronous>, transform_indices = @transform_3, window_bounds = array<i64: 9, 256, 64>}, {transform_indices = @transform_4, window_bounds = array<i64: 1, 4, 64>}]} {
    %c0 = arith.constant 0 : index
    %c0_0 = arith.constant 0 : index
    %c0_1 = arith.constant 0 : index
    %0 = vector.load %arg2[%c0, %c0_0, %c0_1] : memref<1x4x256xf32, #tpu.memory_space<vmem>>, vector<1x4x256xf32>
    %1 = vector.shape_cast %0 : vector<1x4x256xf32> to vector<4x256xf32>
    %cst = arith.constant 0.000000e+00 : f32
    %2 = vector.broadcast %cst : f32 to vector<4x64xf32>
    %c0_2 = arith.constant 0 : index
    %c0_3 = arith.constant 0 : index
    %c0_4 = arith.constant 0 : index
    %c0_5 = arith.constant 0 : index
    %3 = vector.load %arg3[%c0_2, %c0_3, %c0_4, %c0_5] : memref<1x9x4x1xf32, #tpu.memory_space<vmem>>, vector<1x1x4x1xf32>
    %4 = vector.shape_cast %3 : vector<1x1x4x1xf32> to vector<4x1xf32>
    %5 = vector.broadcast %4 : vector<4x1xf32> to vector<4x256xf32>
    %6 = arith.mulf %1, %5 : vector<4x256xf32>
    %c0_6 = arith.constant 0 : index
    %c0_7 = arith.constant 0 : index
    %c0_8 = arith.constant 0 : index
    %7 = vector.load %arg5[%c0_6, %c0_7, %c0_8] : memref<9x256x64xf32, #tpu.memory_space<vmem>>, vector<1x256x64xf32>
    %8 = vector.shape_cast %7 : vector<1x256x64xf32> to vector<256x64xf32>
    %cst_9 = arith.constant dense<0.000000e+00> : vector<4x64xf32>
    %9 = tpu.matmul %6, %8, %cst_9 {dimension_numbers = #tpu.dot_dimension_numbers<[1], [0], [0], [1], [0, 0, 1, 1], [], []>} : vector<4x256xf32>, vector<256x64xf32>, vector<4x64xf32> -> vector<4x64xf32>
    %10 = arith.addf %2, %9 : vector<4x64xf32>
    %c0_10 = arith.constant 0 : index
    %c1 = arith.constant 1 : index
    %c0_11 = arith.constant 0 : index
    %c0_12 = arith.constant 0 : index
    %11 = vector.load %arg3[%c0_10, %c1, %c0_11, %c0_12] : memref<1x9x4x1xf32, #tpu.memory_space<vmem>>, vector<1x1x4x1xf32>
    %12 = vector.shape_cast %11 : vector<1x1x4x1xf32> to vector<4x1xf32>
    %13 = vector.broadcast %12 : vector<4x1xf32> to vector<4x256xf32>
    %14 = arith.mulf %1, %13 : vector<4x256xf32>
    %c1_13 = arith.constant 1 : index
    %c0_14 = arith.constant 0 : index
    %c0_15 = arith.constant 0 : index
    %15 = vector.load %arg5[%c1_13, %c0_14, %c0_15] : memref<9x256x64xf32, #tpu.memory_space<vmem>>, vector<1x256x64xf32>
    %16 = vector.shape_cast %15 : vector<1x256x64xf32> to vector<256x64xf32>
    %cst_16 = arith.constant dense<0.000000e+00> : vector<4x64xf32>
    %17 = tpu.matmul %14, %16, %cst_16 {dimension_numbers = #tpu.dot_dimension_numbers<[1], [0], [0], [1], [0, 0, 1, 1], [], []>} : vector<4x256xf32>, vector<256x64xf32>, vector<4x64xf32> -> vector<4x64xf32>
    %18 = arith.addf %10, %17 : vector<4x64xf32>
    %c0_17 = arith.constant 0 : index
    %c2 = arith.constant 2 : index
    %c0_18 = arith.constant 0 : index
    %c0_19 = arith.constant 0 : index
    %19 = vector.load %arg3[%c0_17, %c2, %c0_18, %c0_19] : memref<1x9x4x1xf32, #tpu.memory_space<vmem>>, vector<1x1x4x1xf32>
    %20 = vector.shape_cast %19 : vector<1x1x4x1xf32> to vector<4x1xf32>
    %21 = vector.broadcast %20 : vector<4x1xf32> to vector<4x256xf32>
    %22 = arith.mulf %1, %21 : vector<4x256xf32>
    %c2_20 = arith.constant 2 : index
    %c0_21 = arith.constant 0 : index
    %c0_22 = arith.constant 0 : index
    %23 = vector.load %arg5[%c2_20, %c0_21, %c0_22] : memref<9x256x64xf32, #tpu.memory_space<vmem>>, vector<1x256x64xf32>
    %24 = vector.shape_cast %23 : vector<1x256x64xf32> to vector<256x64xf32>
    %cst_23 = arith.constant dense<0.000000e+00> : vector<4x64xf32>
    %25 = tpu.matmul %22, %24, %cst_23 {dimension_numbers = #tpu.dot_dimension_numbers<[1], [0], [0], [1], [0, 0, 1, 1], [], []>} : vector<4x256xf32>, vector<256x64xf32>, vector<4x64xf32> -> vector<4x64xf32>
    %26 = arith.addf %18, %25 : vector<4x64xf32>
    %c0_24 = arith.constant 0 : index
    %c3 = arith.constant 3 : index
    %c0_25 = arith.constant 0 : index
    %c0_26 = arith.constant 0 : index
    %27 = vector.load %arg3[%c0_24, %c3, %c0_25, %c0_26] : memref<1x9x4x1xf32, #tpu.memory_space<vmem>>, vector<1x1x4x1xf32>
    %28 = vector.shape_cast %27 : vector<1x1x4x1xf32> to vector<4x1xf32>
    %29 = vector.broadcast %28 : vector<4x1xf32> to vector<4x256xf32>
    %30 = arith.mulf %1, %29 : vector<4x256xf32>
    %c3_27 = arith.constant 3 : index
    %c0_28 = arith.constant 0 : index
    %c0_29 = arith.constant 0 : index
    %31 = vector.load %arg5[%c3_27, %c0_28, %c0_29] : memref<9x256x64xf32, #tpu.memory_space<vmem>>, vector<1x256x64xf32>
    %32 = vector.shape_cast %31 : vector<1x256x64xf32> to vector<256x64xf32>
    %cst_30 = arith.constant dense<0.000000e+00> : vector<4x64xf32>
    %33 = tpu.matmul %30, %32, %cst_30 {dimension_numbers = #tpu.dot_dimension_numbers<[1], [0], [0], [1], [0, 0, 1, 1], [], []>} : vector<4x256xf32>, vector<256x64xf32>, vector<4x64xf32> -> vector<4x64xf32>
    %34 = arith.addf %26, %33 : vector<4x64xf32>
    %c0_31 = arith.constant 0 : index
    %c4 = arith.constant 4 : index
    %c0_32 = arith.constant 0 : index
    %c0_33 = arith.constant 0 : index
    %35 = vector.load %arg3[%c0_31, %c4, %c0_32, %c0_33] : memref<1x9x4x1xf32, #tpu.memory_space<vmem>>, vector<1x1x4x1xf32>
    %36 = vector.shape_cast %35 : vector<1x1x4x1xf32> to vector<4x1xf32>
    %37 = vector.broadcast %36 : vector<4x1xf32> to vector<4x256xf32>
    %38 = arith.mulf %1, %37 : vector<4x256xf32>
    %c4_34 = arith.constant 4 : index
    %c0_35 = arith.constant 0 : index
    %c0_36 = arith.constant 0 : index
    %39 = vector.load %arg5[%c4_34, %c0_35, %c0_36] : memref<9x256x64xf32, #tpu.memory_space<vmem>>, vector<1x256x64xf32>
    %40 = vector.shape_cast %39 : vector<1x256x64xf32> to vector<256x64xf32>
    %cst_37 = arith.constant dense<0.000000e+00> : vector<4x64xf32>
    %41 = tpu.matmul %38, %40, %cst_37 {dimension_numbers = #tpu.dot_dimension_numbers<[1], [0], [0], [1], [0, 0, 1, 1], [], []>} : vector<4x256xf32>, vector<256x64xf32>, vector<4x64xf32> -> vector<4x64xf32>
    %42 = arith.addf %34, %41 : vector<4x64xf32>
    %c0_38 = arith.constant 0 : index
    %c5 = arith.constant 5 : index
    %c0_39 = arith.constant 0 : index
    %c0_40 = arith.constant 0 : index
    %43 = vector.load %arg3[%c0_38, %c5, %c0_39, %c0_40] : memref<1x9x4x1xf32, #tpu.memory_space<vmem>>, vector<1x1x4x1xf32>
    %44 = vector.shape_cast %43 : vector<1x1x4x1xf32> to vector<4x1xf32>
    %45 = vector.broadcast %44 : vector<4x1xf32> to vector<4x256xf32>
    %46 = arith.mulf %1, %45 : vector<4x256xf32>
    %c5_41 = arith.constant 5 : index
    %c0_42 = arith.constant 0 : index
    %c0_43 = arith.constant 0 : index
    %47 = vector.load %arg5[%c5_41, %c0_42, %c0_43] : memref<9x256x64xf32, #tpu.memory_space<vmem>>, vector<1x256x64xf32>
    %48 = vector.shape_cast %47 : vector<1x256x64xf32> to vector<256x64xf32>
    %cst_44 = arith.constant dense<0.000000e+00> : vector<4x64xf32>
    %49 = tpu.matmul %46, %48, %cst_44 {dimension_numbers = #tpu.dot_dimension_numbers<[1], [0], [0], [1], [0, 0, 1, 1], [], []>} : vector<4x256xf32>, vector<256x64xf32>, vector<4x64xf32> -> vector<4x64xf32>
    %50 = arith.addf %42, %49 : vector<4x64xf32>
    %c0_45 = arith.constant 0 : index
    %c6 = arith.constant 6 : index
    %c0_46 = arith.constant 0 : index
    %c0_47 = arith.constant 0 : index
    %51 = vector.load %arg3[%c0_45, %c6, %c0_46, %c0_47] : memref<1x9x4x1xf32, #tpu.memory_space<vmem>>, vector<1x1x4x1xf32>
    %52 = vector.shape_cast %51 : vector<1x1x4x1xf32> to vector<4x1xf32>
    %53 = vector.broadcast %52 : vector<4x1xf32> to vector<4x256xf32>
    %54 = arith.mulf %1, %53 : vector<4x256xf32>
    %c6_48 = arith.constant 6 : index
    %c0_49 = arith.constant 0 : index
    %c0_50 = arith.constant 0 : index
    %55 = vector.load %arg5[%c6_48, %c0_49, %c0_50] : memref<9x256x64xf32, #tpu.memory_space<vmem>>, vector<1x256x64xf32>
    %56 = vector.shape_cast %55 : vector<1x256x64xf32> to vector<256x64xf32>
    %cst_51 = arith.constant dense<0.000000e+00> : vector<4x64xf32>
    %57 = tpu.matmul %54, %56, %cst_51 {dimension_numbers = #tpu.dot_dimension_numbers<[1], [0], [0], [1], [0, 0, 1, 1], [], []>} : vector<4x256xf32>, vector<256x64xf32>, vector<4x64xf32> -> vector<4x64xf32>
    %58 = arith.addf %50, %57 : vector<4x64xf32>
    %c0_52 = arith.constant 0 : index
    %c7 = arith.constant 7 : index
    %c0_53 = arith.constant 0 : index
    %c0_54 = arith.constant 0 : index
    %59 = vector.load %arg3[%c0_52, %c7, %c0_53, %c0_54] : memref<1x9x4x1xf32, #tpu.memory_space<vmem>>, vector<1x1x4x1xf32>
    %60 = vector.shape_cast %59 : vector<1x1x4x1xf32> to vector<4x1xf32>
    %61 = vector.broadcast %60 : vector<4x1xf32> to vector<4x256xf32>
    %62 = arith.mulf %1, %61 : vector<4x256xf32>
    %c7_55 = arith.constant 7 : index
    %c0_56 = arith.constant 0 : index
    %c0_57 = arith.constant 0 : index
    %63 = vector.load %arg5[%c7_55, %c0_56, %c0_57] : memref<9x256x64xf32, #tpu.memory_space<vmem>>, vector<1x256x64xf32>
    %64 = vector.shape_cast %63 : vector<1x256x64xf32> to vector<256x64xf32>
    %cst_58 = arith.constant dense<0.000000e+00> : vector<4x64xf32>
    %65 = tpu.matmul %62, %64, %cst_58 {dimension_numbers = #tpu.dot_dimension_numbers<[1], [0], [0], [1], [0, 0, 1, 1], [], []>} : vector<4x256xf32>, vector<256x64xf32>, vector<4x64xf32> -> vector<4x64xf32>
    %66 = arith.addf %58, %65 : vector<4x64xf32>
    %c0_59 = arith.constant 0 : index
    %c8 = arith.constant 8 : index
    %c0_60 = arith.constant 0 : index
    %c0_61 = arith.constant 0 : index
    %67 = vector.load %arg3[%c0_59, %c8, %c0_60, %c0_61] : memref<1x9x4x1xf32, #tpu.memory_space<vmem>>, vector<1x1x4x1xf32>
    %68 = vector.shape_cast %67 : vector<1x1x4x1xf32> to vector<4x1xf32>
    %69 = vector.broadcast %68 : vector<4x1xf32> to vector<4x256xf32>
    %70 = arith.mulf %1, %69 : vector<4x256xf32>
    %c8_62 = arith.constant 8 : index
    %c0_63 = arith.constant 0 : index
    %c0_64 = arith.constant 0 : index
    %71 = vector.load %arg5[%c8_62, %c0_63, %c0_64] : memref<9x256x64xf32, #tpu.memory_space<vmem>>, vector<1x256x64xf32>
    %72 = vector.shape_cast %71 : vector<1x256x64xf32> to vector<256x64xf32>
    %cst_65 = arith.constant dense<0.000000e+00> : vector<4x64xf32>
    %73 = tpu.matmul %70, %72, %cst_65 {dimension_numbers = #tpu.dot_dimension_numbers<[1], [0], [0], [1], [0, 0, 1, 1], [], []>} : vector<4x256xf32>, vector<256x64xf32>, vector<4x64xf32> -> vector<4x64xf32>
    %74 = arith.addf %66, %73 : vector<4x64xf32>
    %c0_66 = arith.constant 0 : index
    %c0_67 = arith.constant 0 : index
    %c0_68 = arith.constant 0 : index
    %75 = vector.load %arg4[%c0_66, %c0_67, %c0_68] : memref<1x4x1xf32, #tpu.memory_space<vmem>>, vector<1x4x1xf32>
    %76 = vector.shape_cast %75 : vector<1x4x1xf32> to vector<4x1xf32>
    %77 = vector.broadcast %76 : vector<4x1xf32> to vector<4x64xf32>
    %78 = arith.addf %74, %77 : vector<4x64xf32>
    %cst_69 = arith.constant 0.000000e+00 : f32
    %79 = vector.broadcast %cst_69 : f32 to vector<4x64xf32>
    %80 = arith.maximumf %78, %79 : vector<4x64xf32>
    %c0_70 = arith.constant 0 : index
    %c0_71 = arith.constant 0 : index
    %c0_72 = arith.constant 0 : index
    %81 = vector.load %arg6[%c0_70, %c0_71, %c0_72] : memref<1x4x64xf32, #tpu.memory_space<vmem>>, vector<1x4x64xf32>
    %82 = vector.shape_cast %81 : vector<1x4x64xf32> to vector<4x64xf32>
    %83 = vector.shape_cast %80 : vector<4x64xf32> to vector<1x4x64xf32>
    tpu.vector_store %arg6[%c0_70, %c0_71, %c0_72], %83 {strides = array<i32>} : memref<1x4x64xf32, #tpu.memory_space<vmem>>, vector<1x4x64xf32>,
    return
  }
  func.func @transform_0(%arg0: i32, %arg1: i32) -> (i32, i32, i32) {
    %c0_i32 = arith.constant 0 : i32
    %c0_i32_0 = arith.constant 0 : i32
    return %arg0, %arg1, %c0_i32 : i32, i32, i32
  }
  func.func @transform_1(%arg0: i32, %arg1: i32) -> (i32, i32, i32, i32) {
    %c0_i32 = arith.constant 0 : i32
    %c0_i32_0 = arith.constant 0 : i32
    %c0_i32_1 = arith.constant 0 : i32
    %c0_i32_2 = arith.constant 0 : i32
    return %arg1, %c0_i32, %c0_i32_0, %c0_i32_1 : i32, i32, i32, i32
  }
  func.func @transform_2(%arg0: i32, %arg1: i32) -> (i32, i32, i32) {
    %c0_i32 = arith.constant 0 : i32
    %c0_i32_0 = arith.constant 0 : i32
    %c0_i32_1 = arith.constant 0 : i32
    return %arg1, %c0_i32, %c0_i32_0 : i32, i32, i32
  }
  func.func @transform_3(%arg0: i32, %arg1: i32) -> (i32, i32, i32) {
    %c0_i32 = arith.constant 0 : i32
    %c0_i32_0 = arith.constant 0 : i32
    %c0_i32_1 = arith.constant 0 : i32
    %c0_i32_2 = arith.constant 0 : i32
    return %c0_i32, %c0_i32_0, %c0_i32_1 : i32, i32, i32
  }
  func.func @transform_4(%arg0: i32, %arg1: i32) -> (i32, i32, i32) {
    %c0_i32 = arith.constant 0 : i32
    %c0_i32_0 = arith.constant 0 : i32
    return %arg0, %arg1, %c0_i32 : i32, i32, i32
  }
}

</mosaic_0001>

<llo_original>
// kernel: tpu_custom_call.1
$region0: #{tpu_custom_call.1}
  #allocation0 [shape = 'u32[]', space=smem, size = 0x4, offset = 0x4, fixed_abs, tag = 'smem constant byte address 0x4 - core index']
  #allocation1 [shape = 'u32[144,128]{1,0:T(1,128)}', space=vmem, size = 0x12000, scoped, tag = 'internal scratch']
  %s0 = inlined_call_operand.vmem [shape: f32[2,4,256], index: 0, kind: input, shape index: {}]
  %s1 = inlined_call_operand.vmem [shape: f32[1,9,4,1], index: 1, kind: input, shape index: {}]
  %s2 = inlined_call_operand.vmem [shape: f32[1,4,1], index: 2, kind: input, shape index: {}]
  %s3 = inlined_call_operand.vmem [shape: f32[9,256,64], index: 3, kind: input, shape index: {}]
  %s4 = inlined_call_operand.hbm [shape: f32[2,4,64], index: 4, kind: output, shape index: {}]
  %s5 = sld [smem:[#allocation0]]
  $region49: #{tpu_custom_call.1} parent=0
    _
  %s7 = ssub.s32 1, %s5
  %s8 = scalar_select 0, %s7, %s5
  $region1: #{tpu_custom_call.1} parent=0
    #allocation2 [shape = 'u8[4096]{0}', space=vmem, size = 0x1000, scoped, tag = 'output window, operand 0']
    #allocation3 [shape = 's32[2]{0}', space=sflag, size = 0x8, scoped, tag = 'scoped memory for tpu_custom_call.1']
    %9 = vsyncpa [#allocation3], 0
    %s10 = scalar_lea.sflag [#allocation3], 1
    %11 = vsyncpa %s10, 0
    loop: start=0, step=1, limit=4
    $region2: #{tpu_custom_call.1} parent=1 // loop_pre_header
      _
    $region3: #{tpu_custom_call.1} parent=1 // loop_header
      %s13 = sphi 0, %s17
      %p14 = scmp.ge.s32.totalorder %s13, 4
      %s20 = sphi 0, %s32
      %s21 = sphi 0, %s28
      %s22 = sphi 0, %s20
      %s23 = sphi 0, %s21
      %s24 = sphi 0, %s22
      %s25 = sphi 0, %s23
      %s37 = sphi 0, %s39
      %s40 = sphi 0, %s37
      %s41 = sphi 0, %s40
      %s57 = sphi 0, %s41
      %s63 = sphi 0, %s65
      %s66 = sphi 0, %s63
      %s67 = sphi 0, %s66
      %s83 = sphi 0, %s67
      %s89 = sphi 0, %s91
      %s92 = sphi 0, %s89
      %s93 = sphi 0, %s92
      %s109 = sphi 0, %s93
      %s113 = sphi 0, %s113
      %s115 = sphi 0, %s113
      %s116 = sphi 0, %s115
      %s130 = sphi 0, %s116
      %s138 = sphi 0, %s140
      %s141 = sphi 0, %s138
      %s142 = sphi 0, %s141
      %s158 = sphi 0, %s142
    $region4: #{tpu_custom_call.1} parent=1 // loop_header_branch
      %16 = sbr.rel (%p14) target = $region8
    $region5: #{tpu_custom_call.1} parent=1 // loop_body
      %s18 = ssub.s32 %s13, 1
      %s19 = ssub.s32 %s13, 2
      %s26 = sadd.s32 1, %s21
      %p27 = scmp.ge.s32.totalorder %s26, 1
      %s28 = scalar_select %p27, 0, %s26
      %s29 = sadd.s32 1, %s20
      %s30 = scalar_select %p27, %s29, %s20
      %p31 = scmp.ge.s32.totalorder %s30, 2
      %s32 = scalar_select %p31, 0, %s30
      %s33 = ssub.s32 %s20, %s32
      %s34 = ssub.s32 %s21, %s28
      %s35 = sor.u32 %s33, %s34
      %p36 = scmp.eq.s32.totalorder %s35, 0
      %s38 = sadd.s32 %s37, 1
      %s39 = scalar_select %p36, %s37, %s38
      %p42 = pneg %p36
      %p43 = scmp.eq.s32.totalorder %s13, 1
      %p44 = por %p42, %p43
      %p45 = scmp.ne.s32.totalorder %s37, %s40
      %p46 = scmp.eq.s32.totalorder %s13, 0
      %p47 = por %p45, %p46
      %p48 = scmp.ne.s32.totalorder %s37, %s40
      %p49 = scmp.eq.s32.totalorder %s18, 1
      %p50 = por %p48, %p49
      %p51 = scmp.ne.s32.totalorder %s40, %s41
      %p52 = scmp.eq.s32.totalorder %s18, 0
      %p53 = por %p51, %p52
      %p54 = scmp.ne.s32.totalorder %s40, %s41
      %p55 = scmp.eq.s32.totalorder %s19, 1
      %p56 = por %p54, %p55
      %p58 = scmp.ne.s32.totalorder %s41, %s57
      %p59 = scmp.eq.s32.totalorder %s19, 0
      %p60 = por %p58, %p59
      %s61 = ssub.s32 %s21, %s28
      %p62 = scmp.eq.s32.totalorder %s61, 0
      %s64 = sadd.s32 %s63, 1
      %s65 = scalar_select %p62, %s63, %s64
      %p68 = pneg %p62
      %p69 = scmp.eq.s32.totalorder %s13, 1
      %p70 = por %p68, %p69
      %p71 = scmp.ne.s32.totalorder %s63, %s66
      %p72 = scmp.eq.s32.totalorder %s13, 0
      %p73 = por %p71, %p72
      %p74 = scmp.ne.s32.totalorder %s63, %s66
      %p75 = scmp.eq.s32.totalorder %s18, 1
      %p76 = por %p74, %p75
      %p77 = scmp.ne.s32.totalorder %s66, %s67
      %p78 = scmp.eq.s32.totalorder %s18, 0
      %p79 = por %p77, %p78
      %p80 = scmp.ne.s32.totalorder %s66, %s67
      %p81 = scmp.eq.s32.totalorder %s19, 1
      %p82 = por %p80, %p81
      %p84 = scmp.ne.s32.totalorder %s67, %s83
      %p85 = scmp.eq.s32.totalorder %s19, 0
      %p86 = por %p84, %p85
      %s87 = ssub.s32 %s21, %s28
      %p88 = scmp.eq.s32.totalorder %s87, 0
      %s90 = sadd.s32 %s89, 1
      %s91 = scalar_select %p88, %s89, %s90
      %p94 = pneg %p88
      %p95 = scmp.eq.s32.totalorder %s13, 1
      %p96 = por %p94, %p95
      %p97 = scmp.ne.s32.totalorder %s89, %s92
      %p98 = scmp.eq.s32.totalorder %s13, 0
      %p99 = por %p97, %p98
      %p100 = scmp.ne.s32.totalorder %s89, %s92
      %p101 = scmp.eq.s32.totalorder %s18, 1
      %p102 = por %p100, %p101
      %p103 = scmp.ne.s32.totalorder %s92, %s93
      %p104 = scmp.eq.s32.totalorder %s18, 0
      %p105 = por %p103, %p104
      %p106 = scmp.ne.s32.totalorder %s92, %s93
      %p107 = scmp.eq.s32.totalorder %s19, 1
      %p108 = por %p106, %p107
      %p110 = scmp.ne.s32.totalorder %s93, %s109
      %p111 = scmp.eq.s32.totalorder %s19, 0
      %p112 = por %p110, %p111
      %s114 = sadd.s32 %s113, 1
      %p117 = scmp.eq.s32.totalorder %s13, 1
      %p118 = scmp.ne.s32.totalorder %s113, %s115
      %p119 = scmp.eq.s32.totalorder %s13, 0
      %p120 = por %p118, %p119
      %p121 = scmp.ne.s32.totalorder %s113, %s115
      %p122 = scmp.eq.s32.totalorder %s18, 1
      %p123 = por %p121, %p122
      %p124 = scmp.ne.s32.totalorder %s115, %s116
      %p125 = scmp.eq.s32.totalorder %s18, 0
      %p126 = por %p124, %p125
      %p127 = scmp.ne.s32.totalorder %s115, %s116
      %p128 = scmp.eq.s32.totalorder %s19, 1
      %p129 = por %p127, %p128
      %p131 = scmp.ne.s32.totalorder %s116, %s130
      %p132 = scmp.eq.s32.totalorder %s19, 0
      %p133 = por %p131, %p132
      %s134 = ssub.s32 %s20, %s32
      %s135 = ssub.s32 %s21, %s28
      %s136 = sor.u32 %s134, %s135
      %p137 = scmp.eq.s32.totalorder %s136, 0
      %s139 = sadd.s32 %s138, 1
      %s140 = scalar_select %p137, %s138, %s139
      %p143 = pneg %p137
      %p144 = scmp.eq.s32.totalorder %s13, 1
      %p145 = por %p143, %p144
      %p146 = scmp.ne.s32.totalorder %s138, %s141
      %p147 = scmp.eq.s32.totalorder %s13, 0
      %p148 = por %p146, %p147
      %p149 = scmp.ne.s32.totalorder %s138, %s141
      %p150 = scmp.eq.s32.totalorder %s18, 1
      %p151 = por %p149, %p150
      %p152 = scmp.ne.s32.totalorder %s141, %s142
      %p153 = scmp.eq.s32.totalorder %s18, 0
      %p154 = por %p152, %p153
      %p155 = scmp.ne.s32.totalorder %s141, %s142
      %p156 = scmp.eq.s32.totalorder %s19, 1
      %p157 = por %p155, %p156
      %p159 = scmp.ne.s32.totalorder %s142, %s158
      %p160 = scmp.eq.s32.totalorder %s19, 0
      %p161 = por %p159, %p160
      %p162 = scmp.le.s32.totalorder 1, %s13
      %p163 = scmp.lt.s32.totalorder %s13, 3
      %p164 = pnand %p162, %p163
      %p165 = pneg %p164
      // Predicated region
      $region9: #{tpu_custom_call.1} parent=5 // pred_check
        _
      $region10: #{tpu_custom_call.1} parent=5 // pred_check_branch
        %167 = sbr.rel (%p164) target = $region12
      $region11: #{tpu_custom_call.1} parent=5 // pred_region
        %s168 = ssub.s32 %s13, 1
        // Predicated region
        $region13: #{tpu_custom_call.1} parent=11 // pred_check
          %p169 = pneg %p79
        $region14: #{tpu_custom_call.1} parent=11 // pred_check_branch
          %171 = sbr.rel (%p169) target = $region16
        $region15: #{tpu_custom_call.1} parent=11 // pred_region
          %p172 = scmp.lt.s32.totalorder %s23, 0
          %s173 = scalar_select %p172, %s23, 0
          %s174 = smul.addr %s173, 9
          %s175 = smul.addr %s174, 4
          %s176 = scalar_lea.vmem %s1, %s175
        $region16: #{tpu_custom_call.1} parent=11 // pred_fallthru
          _
        // Predicated region
        $region17: #{tpu_custom_call.1} parent=11 // pred_check
          %p177 = pneg %p105
        $region18: #{tpu_custom_call.1} parent=11 // pred_check_branch
          %179 = sbr.rel (%p177) target = $region20
        $region19: #{tpu_custom_call.1} parent=11 // pred_region
          %p180 = scmp.lt.s32.totalorder %s23, 0
          %s181 = scalar_select %p180, %s23, 0
          %s182 = smul.addr %s181, 4
          %s183 = scalar_lea.vmem %s2, %s182
        $region20: #{tpu_custom_call.1} parent=11 // pred_fallthru
          _
        // Predicated region
        $region21: #{tpu_custom_call.1} parent=11 // pred_check
          %p184 = pneg %p126
        $region22: #{tpu_custom_call.1} parent=11 // pred_check_branch
          %186 = sbr.rel (%p184) target = $region24
        $region23: #{tpu_custom_call.1} parent=11 // pred_region
          _
        $region24: #{tpu_custom_call.1} parent=11 // pred_fallthru
          _
      $region12: #{tpu_custom_call.1} parent=5 // pred_fallthru
        _
      %p187 = scmp.lt.s32.totalorder %s13, 2
      // Predicated region
      $region25: #{tpu_custom_call.1} parent=5 // pred_check
        %p188 = pneg %p187
      $region26: #{tpu_custom_call.1} parent=5 // pred_check_branch
        %190 = sbr.rel (%p188) target = $region28
      $region27: #{tpu_custom_call.1} parent=5 // pred_region
        // Predicated region
        $region29: #{tpu_custom_call.1} parent=27 // pred_check
          %p191 = pneg %p47
        $region30: #{tpu_custom_call.1} parent=27 // pred_check_branch
          %193 = sbr.rel (%p191) target = $region32
        $region31: #{tpu_custom_call.1} parent=27 // pred_region
          %p194 = scmp.lt.s32.totalorder %s20, 1
          %s195 = scalar_select %p194, %s20, 1
          %p196 = scmp.lt.s32.totalorder %s21, 0
          %s197 = scalar_select %p196, %s21, 0
          %s198 = smul.addr %s197, 2
          %s199 = smul.addr %s195, 2
          %s200 = sadd.s32 %s198, %s199
          %s201 = smul.addr %s200, 4
          %s202 = scalar_lea.vmem %s0, %s201
        $region32: #{tpu_custom_call.1} parent=27 // pred_fallthru
          _
      $region28: #{tpu_custom_call.1} parent=5 // pred_fallthru
        _
      %p203 = scmp.le.s32.totalorder 1, %s13
      %p204 = scmp.lt.s32.totalorder %s13, 3
      %p205 = pnand %p203, %p204
      %p206 = pneg %p205
      // Predicated region
      $region33: #{tpu_custom_call.1} parent=5 // pred_check
        _
      $region34: #{tpu_custom_call.1} parent=5 // pred_check_branch
        %208 = sbr.rel (%p205) target = $region36
      $region35: #{tpu_custom_call.1} parent=5 // pred_region
        %s209 = ssub.s32 %s13, 1
        %p210 = scmp.lt.s32.totalorder %s22, 1
        %s211 = scalar_select %p210, %s22, 1
        %p212 = scmp.lt.s32.totalorder %s23, 0
        %s213 = scalar_select %p212, %s23, 0
        %s214 = smul.addr %s213, 2
        %s215 = smul.addr %s211, 2
        %s216 = sadd.s32 %s214, %s215
        %s217 = smul.addr %s216, 4
        %s218 = scalar_lea.vmem %s0, %s217
        %p219 = pneg %p53
        %p220 = pneg %p50
        %p221 = scmp.lt.s32.totalorder %s23, 0
        %s222 = scalar_select %p221, %s23, 0
        %s223 = smul.addr %s222, 9
        %s224 = smul.addr %s223, 4
        %s225 = scalar_lea.vmem %s1, %s224
        %p226 = pneg %p79
        %p227 = pneg %p76
        %p228 = scmp.lt.s32.totalorder %s23, 0
        %s229 = scalar_select %p228, %s23, 0
        %s230 = smul.addr %s229, 4
        %s231 = scalar_lea.vmem %s2, %s230
        %p232 = pneg %p105
        %p233 = pneg %p102
        %p234 = pneg %p126
        %p235 = pneg %p123
        %p236 = pneg %p154
        %p237 = pneg %p151
        %s238 = sand.u32 %s141, 1
        %s239 = scalar_lea.sflag [#allocation3], %s238
        %s240 = sand.u32 %s141, 1
        %s241 = smul.addr %s240, 4
        %s242 = scalar_lea.vmem [#allocation2], %s241
        %p243 = scmp.lt.s32.totalorder %s22, 1
        %s244 = scalar_select %p243, %s22, 1
        %p245 = scmp.lt.s32.totalorder %s23, 0
        %s246 = scalar_select %p245, %s23, 0
        %s247 = smul.addr %s246, 2
        %s248 = smul.addr %s244, 2
        %s249 = sadd.s32 %s247, %s248
        %s250 = smul.addr %s249, 4
        %s251 = scalar_lea.vmem %s0, %s250
        %p252 = scmp.lt.s32.totalorder %s23, 0
        %s253 = scalar_select %p252, %s23, 0
        %s254 = smul.addr %s253, 9
        %s255 = smul.addr %s254, 4
        %s256 = scalar_lea.vmem %s1, %s255
        %p257 = scmp.lt.s32.totalorder %s23, 0
        %s258 = scalar_select %p257, %s23, 0
        %s259 = smul.addr %s258, 4
        %s260 = scalar_lea.vmem %s2, %s259
        %v261 = vld [vmem:[%s251] sm:$0xff]
        %v262 = vld [vmem:[%s256] sm:$0xf]
        %264 = vset.pattern.permute.xlu0 0
        %265 = vperm.xlu0 %264, %v262
        %v266 = vpop.permute.xlu0 %265
        %v268 = vunpack.c.l.s4 839922192
        %v269 = vunpack.c.0.s8 %v268
        %v270 = vlaneseq
        %v271 = vshrl.u32 %v270, 7
        %v272 = vsub.s32 %v269, %v271
        %v273 = vrot.slane %v266, %v272
        %v275 = vmul.f32 %v261, %v273
        %v276 = vld [vmem:[%s3] sm:$0xff]
        %v277 = vld [vmem:[%s3 + $0x8] sm:$0xff]
        %v278 = vld [vmem:[%s3 + $0x10] sm:$0xff]
        %v279 = vld [vmem:[%s3 + $0x18] sm:$0xff]
        %v280 = vld [vmem:[%s3 + $0x20] sm:$0xff]
        %v281 = vld [vmem:[%s3 + $0x28] sm:$0xff]
        %v282 = vld [vmem:[%s3 + $0x30] sm:$0xff]
        %v283 = vld [vmem:[%s3 + $0x38] sm:$0xff]
        %v284 = vld [vmem:[%s3 + $0x40] sm:$0xff]
        %v285 = vld [vmem:[%s3 + $0x48] sm:$0xff]
        %v286 = vld [vmem:[%s3 + $0x50] sm:$0xff]
        %v287 = vld [vmem:[%s3 + $0x58] sm:$0xff]
        %v288 = vld [vmem:[%s3 + $0x60] sm:$0xff]
        %v289 = vld [vmem:[%s3 + $0x68] sm:$0xff]
        %v290 = vld [vmem:[%s3 + $0x70] sm:$0xff]
        %v291 = vld [vmem:[%s3 + $0x78] sm:$0xff]
        %v292 = vld [vmem:[%s3 + $0x80] sm:$0xff]
        %v293 = vld [vmem:[%s3 + $0x88] sm:$0xff]
        %v294 = vld [vmem:[%s3 + $0x90] sm:$0xff]
        %v295 = vld [vmem:[%s3 + $0x98] sm:$0xff]
        %v296 = vld [vmem:[%s3 + $0xa0] sm:$0xff]
        %v297 = vld [vmem:[%s3 + $0xa8] sm:$0xff]
        %v298 = vld [vmem:[%s3 + $0xb0] sm:$0xff]
        %v299 = vld [vmem:[%s3 + $0xb8] sm:$0xff]
        %v300 = vld [vmem:[%s3 + $0xc0] sm:$0xff]
        %v301 = vld [vmem:[%s3 + $0xc8] sm:$0xff]
        %v302 = vld [vmem:[%s3 + $0xd0] sm:$0xff]
        %v303 = vld [vmem:[%s3 + $0xd8] sm:$0xff]
        %v304 = vld [vmem:[%s3 + $0xe0] sm:$0xff]
        %v305 = vld [vmem:[%s3 + $0xe8] sm:$0xff]
        %v306 = vld [vmem:[%s3 + $0xf0] sm:$0xff]
        %v307 = vld [vmem:[%s3 + $0xf8] sm:$0xff]
        %s308 = scalar_lea.vmem %s256, 4
        %v309 = vld [vmem:[%s308] sm:$0xf]
        %311 = vset.pattern.permute.xlu0 0
        %312 = vperm.xlu0 %311, %v309
        %v313 = vpop.permute.xlu0 %312
        %v315 = vunpack.c.l.s4 839922192
        %v316 = vunpack.c.0.s8 %v315
        %v317 = vlaneseq
        %v318 = vshrl.u32 %v317, 7
        %v319 = vsub.s32 %v316, %v318
        %v320 = vrot.slane %v313, %v319
        %v322 = vmul.f32 %v261, %v320
        %s323 = scalar_lea.vmem %s3, 256
        %v324 = vld [vmem:[%s323] sm:$0xff]
        %v325 = vld [vmem:[%s323 + $0x8] sm:$0xff]
        %v326 = vld [vmem:[%s323 + $0x10] sm:$0xff]
        %v327 = vld [vmem:[%s323 + $0x18] sm:$0xff]
        %v328 = vld [vmem:[%s323 + $0x20] sm:$0xff]
        %v329 = vld [vmem:[%s323 + $0x28] sm:$0xff]
        %v330 = vld [vmem:[%s323 + $0x30] sm:$0xff]
        %v331 = vld [vmem:[%s323 + $0x38] sm:$0xff]
        %v332 = vld [vmem:[%s323 + $0x40] sm:$0xff]
        %v333 = vld [vmem:[%s323 + $0x48] sm:$0xff]
        %v334 = vld [vmem:[%s323 + $0x50] sm:$0xff]
        %v335 = vld [vmem:[%s323 + $0x58] sm:$0xff]
        %v336 = vld [vmem:[%s323 + $0x60] sm:$0xff]
        %v337 = vld [vmem:[%s323 + $0x68] sm:$0xff]
        %v338 = vld [vmem:[%s323 + $0x70] sm:$0xff]
        %v339 = vld [vmem:[%s323 + $0x78] sm:$0xff]
        %v340 = vld [vmem:[%s323 + $0x80] sm:$0xff]
        %v341 = vld [vmem:[%s323 + $0x88] sm:$0xff]
        %v342 = vld [vmem:[%s323 + $0x90] sm:$0xff]
        %v343 = vld [vmem:[%s323 + $0x98] sm:$0xff]
        %v344 = vld [vmem:[%s323 + $0xa0] sm:$0xff]
        %v345 = vld [vmem:[%s323 + $0xa8] sm:$0xff]
        %v346 = vld [vmem:[%s323 + $0xb0] sm:$0xff]
        %v347 = vld [vmem:[%s323 + $0xb8] sm:$0xff]
        %v348 = vld [vmem:[%s323 + $0xc0] sm:$0xff]
        %v349 = vld [vmem:[%s323 + $0xc8] sm:$0xff]
        %v350 = vld [vmem:[%s323 + $0xd0] sm:$0xff]
        %v351 = vld [vmem:[%s323 + $0xd8] sm:$0xff]
        %v352 = vld [vmem:[%s323 + $0xe0] sm:$0xff]
        %v353 = vld [vmem:[%s323 + $0xe8] sm:$0xff]
        %v354 = vld [vmem:[%s323 + $0xf0] sm:$0xff]
        %v355 = vld [vmem:[%s323 + $0xf8] sm:$0xff]
        %v357 = vcombine.high %v322, %v322
        %359 = vmatprep.subr.mxu0 0.0
        %360 = vmatpush1.msra.mxu0 %v339
        %361 = vmatprep.subr.mxu0 0.0
        %362 = vmatpush1.msra.mxu0 %v338
        %363 = vmatprep.subr.mxu0 0.0
        %364 = vmatpush1.msra.mxu0 %v337
        %365 = vmatprep.subr.mxu0 0.0
        %366 = vmatpush1.msra.mxu0 %v336
        %367 = vmatprep.subr.mxu0 0.0
        %368 = vmatpush1.msra.mxu0 %v335
        %369 = vmatprep.subr.mxu0 0.0
        %370 = vmatpush1.msra.mxu0 %v334
        %371 = vmatprep.subr.mxu0 0.0
        %372 = vmatpush1.msra.mxu0 %v333
        %373 = vmatprep.subr.mxu0 0.0
        %374 = vmatpush1.msra.mxu0 %v332
        %375 = vmatprep.subr.mxu0 0.0
        %376 = vmatpush1.msra.mxu0 %v331
        %377 = vmatprep.subr.mxu0 0.0
        %378 = vmatpush1.msra.mxu0 %v330
        %379 = vmatprep.subr.mxu0 0.0
        %380 = vmatpush1.msra.mxu0 %v329
        %381 = vmatprep.subr.mxu0 0.0
        %382 = vmatpush1.msra.mxu0 %v328
        %383 = vmatprep.subr.mxu0 0.0
        %384 = vmatpush1.msra.mxu0 %v327
        %385 = vmatprep.subr.mxu0 0.0
        %386 = vmatpush1.msra.mxu0 %v326
        %387 = vmatprep.subr.mxu0 0.0
        %388 = vmatpush1.msra.mxu0 %v325
        %389 = vmatprep.subr.mxu0 0.0
        %390 = vmatpush1.msra.mxu0 %v324
        %391 = vmatprep.subr.mxu0 0.0
        %392 = vmatpush2.msra.mxu0 %v355
        %393 = vmatprep.subr.mxu0 0.0
        %394 = vmatpush2.msra.mxu0 %v354
        %395 = vmatprep.subr.mxu0 0.0
        %396 = vmatpush2.msra.mxu0 %v353
        %397 = vmatprep.subr.mxu0 0.0
        %398 = vmatpush2.msra.mxu0 %v352
        %399 = vmatprep.subr.mxu0 0.0
        %400 = vmatpush2.msra.mxu0 %v351
        %401 = vmatprep.subr.mxu0 0.0
        %402 = vmatpush2.msra.mxu0 %v350
        %403 = vmatprep.subr.mxu0 0.0
        %404 = vmatpush2.msra.mxu0 %v349
        %405 = vmatprep.subr.mxu0 0.0
        %406 = vmatpush2.msra.mxu0 %v348
        %407 = vmatprep.subr.mxu0 0.0
        %408 = vmatpush2.msra.mxu0 %v347
        %409 = vmatprep.subr.mxu0 0.0
        %410 = vmatpush2.msra.mxu0 %v346
        %411 = vmatprep.subr.mxu0 0.0
        %412 = vmatpush2.msra.mxu0 %v345
        %413 = vmatprep.subr.mxu0 0.0
        %414 = vmatpush2.msra.mxu0 %v344
        %415 = vmatprep.subr.mxu0 0.0
        %416 = vmatpush2.msra.mxu0 %v343
        %417 = vmatprep.subr.mxu0 0.0
        %418 = vmatpush2.msra.mxu0 %v342
        %419 = vmatprep.subr.mxu0 0.0
        %420 = vmatpush2.msra.mxu0 %v341
        %421 = vmatprep.subr.mxu0 0.0
        %422 = vmatpush2.msra.mxu0 %v340
        %423 = vmatprep.mubr.f32.mxu0 %v357
        %424 = vmatmul.mubr.f32.gmra.mxu0 %v322
        %v425 = vpop.f32.mrf.mxu0
        %v426 = vadd.f32 0.0, %v425
        %v427 = vpop.f32.mrf.mxu0
        %428 = vdwg.mxu0
        %v430 = vcombine.high %v275, %v275
        %432 = vmatprep.subr.mxu0 0.0
        %433 = vmatpush1.msra.mxu0 %v291
        %434 = vmatprep.subr.mxu0 0.0
        %435 = vmatpush1.msra.mxu0 %v290
        %436 = vmatprep.subr.mxu0 0.0
        %437 = vmatpush1.msra.mxu0 %v289
        %438 = vmatprep.subr.mxu0 0.0
        %439 = vmatpush1.msra.mxu0 %v288
        %440 = vmatprep.subr.mxu0 0.0
        %441 = vmatpush1.msra.mxu0 %v287
        %442 = vmatprep.subr.mxu0 0.0
        %443 = vmatpush1.msra.mxu0 %v286
        %444 = vmatprep.subr.mxu0 0.0
        %445 = vmatpush1.msra.mxu0 %v285
        %446 = vmatprep.subr.mxu0 0.0
        %447 = vmatpush1.msra.mxu0 %v284
        %448 = vmatprep.subr.mxu0 0.0
        %449 = vmatpush1.msra.mxu0 %v283
        %450 = vmatprep.subr.mxu0 0.0
        %451 = vmatpush1.msra.mxu0 %v282
        %452 = vmatprep.subr.mxu0 0.0
        %453 = vmatpush1.msra.mxu0 %v281
        %454 = vmatprep.subr.mxu0 0.0
        %455 = vmatpush1.msra.mxu0 %v280
        %456 = vmatprep.subr.mxu0 0.0
        %457 = vmatpush1.msra.mxu0 %v279
        %458 = vmatprep.subr.mxu0 0.0
        %459 = vmatpush1.msra.mxu0 %v278
        %460 = vmatprep.subr.mxu0 0.0
        %461 = vmatpush1.msra.mxu0 %v277
        %462 = vmatprep.subr.mxu0 0.0
        %463 = vmatpush1.msra.mxu0 %v276
        %464 = vmatprep.subr.mxu0 0.0
        %465 = vmatpush2.msra.mxu0 %v307
        %466 = vmatprep.subr.mxu0 0.0
        %467 = vmatpush2.msra.mxu0 %v306
        %468 = vmatprep.subr.mxu0 0.0
        %469 = vmatpush2.msra.mxu0 %v305
        %470 = vmatprep.subr.mxu0 0.0
        %471 = vmatpush2.msra.mxu0 %v304
        %472 = vmatprep.subr.mxu0 0.0
        %473 = vmatpush2.msra.mxu0 %v303
        %474 = vmatprep.subr.mxu0 0.0
        %475 = vmatpush2.msra.mxu0 %v302
        %476 = vmatprep.subr.mxu0 0.0
        %477 = vmatpush2.msra.mxu0 %v301
        %478 = vmatprep.subr.mxu0 0.0
        %479 = vmatpush2.msra.mxu0 %v300
        %480 = vmatprep.subr.mxu0 0.0
        %481 = vmatpush2.msra.mxu0 %v299
        %482 = vmatprep.subr.mxu0 0.0
        %483 = vmatpush2.msra.mxu0 %v298
        %484 = vmatprep.subr.mxu0 0.0
        %485 = vmatpush2.msra.mxu0 %v297
        %486 = vmatprep.subr.mxu0 0.0
        %487 = vmatpush2.msra.mxu0 %v296
        %488 = vmatprep.subr.mxu0 0.0
        %489 = vmatpush2.msra.mxu0 %v295
        %490 = vmatprep.subr.mxu0 0.0
        %491 = vmatpush2.msra.mxu0 %v294
        %492 = vmatprep.subr.mxu0 0.0
        %493 = vmatpush2.msra.mxu0 %v293
        %494 = vmatprep.subr.mxu0 0.0
        %495 = vmatpush2.msra.mxu0 %v292
        %496 = vmatprep.mubr.f32.mxu0 %v430
        %497 = vmatmul.mubr.f32.gmra.mxu0 %v275
        %v498 = vpop.f32.mrf.mxu0
        %v499 = vadd.f32 %v426, %v498
        %v500 = vpop.f32.mrf.mxu0
        %501 = vdwg.mxu0
        %s502 = scalar_lea.vmem %s256, 8
        %v503 = vld [vmem:[%s502] sm:$0xf]
        %505 = vset.pattern.permute.xlu0 0
        %506 = vperm.xlu0 %505, %v503
        %v507 = vpop.permute.xlu0 %506
        %v509 = vunpack.c.l.s4 839922192
        %v510 = vunpack.c.0.s8 %v509
        %v511 = vlaneseq
        %v512 = vshrl.u32 %v511, 7
        %v513 = vsub.s32 %v510, %v512
        %v514 = vrot.slane %v507, %v513
        %v516 = vmul.f32 %v261, %v514
        %s517 = scalar_lea.vmem %s3, 512
        %v518 = vld [vmem:[%s517] sm:$0xff]
        %v519 = vld [vmem:[%s517 + $0x8] sm:$0xff]
        %v520 = vld [vmem:[%s517 + $0x10] sm:$0xff]
        %v521 = vld [vmem:[%s517 + $0x18] sm:$0xff]
        %v522 = vld [vmem:[%s517 + $0x20] sm:$0xff]
        %v523 = vld [vmem:[%s517 + $0x28] sm:$0xff]
        %v524 = vld [vmem:[%s517 + $0x30] sm:$0xff]
        %v525 = vld [vmem:[%s517 + $0x38] sm:$0xff]
        %v526 = vld [vmem:[%s517 + $0x40] sm:$0xff]
        %v527 = vld [vmem:[%s517 + $0x48] sm:$0xff]
        %v528 = vld [vmem:[%s517 + $0x50] sm:$0xff]
        %v529 = vld [vmem:[%s517 + $0x58] sm:$0xff]
        %v530 = vld [vmem:[%s517 + $0x60] sm:$0xff]
        %v531 = vld [vmem:[%s517 + $0x68] sm:$0xff]
        %v532 = vld [vmem:[%s517 + $0x70] sm:$0xff]
        %v533 = vld [vmem:[%s517 + $0x78] sm:$0xff]
        %v534 = vld [vmem:[%s517 + $0x80] sm:$0xff]
        %v535 = vld [vmem:[%s517 + $0x88] sm:$0xff]
        %v536 = vld [vmem:[%s517 + $0x90] sm:$0xff]
        %v537 = vld [vmem:[%s517 + $0x98] sm:$0xff]
        %v538 = vld [vmem:[%s517 + $0xa0] sm:$0xff]
        %v539 = vld [vmem:[%s517 + $0xa8] sm:$0xff]
        %v540 = vld [vmem:[%s517 + $0xb0] sm:$0xff]
        %v541 = vld [vmem:[%s517 + $0xb8] sm:$0xff]
        %v542 = vld [vmem:[%s517 + $0xc0] sm:$0xff]
        %v543 = vld [vmem:[%s517 + $0xc8] sm:$0xff]
        %v544 = vld [vmem:[%s517 + $0xd0] sm:$0xff]
        %v545 = vld [vmem:[%s517 + $0xd8] sm:$0xff]
        %v546 = vld [vmem:[%s517 + $0xe0] sm:$0xff]
        %v547 = vld [vmem:[%s517 + $0xe8] sm:$0xff]
        %v548 = vld [vmem:[%s517 + $0xf0] sm:$0xff]
        %v549 = vld [vmem:[%s517 + $0xf8] sm:$0xff]
        %v551 = vcombine.high %v516, %v516
        %553 = vmatprep.subr.mxu0 0.0
        %554 = vmatpush1.msra.mxu0 %v533
        %555 = vmatprep.subr.mxu0 0.0
        %556 = vmatpush1.msra.mxu0 %v532
        %557 = vmatprep.subr.mxu0 0.0
        %558 = vmatpush1.msra.mxu0 %v531
        %559 = vmatprep.subr.mxu0 0.0
        %560 = vmatpush1.msra.mxu0 %v530
        %561 = vmatprep.subr.mxu0 0.0
        %562 = vmatpush1.msra.mxu0 %v529
        %563 = vmatprep.subr.mxu0 0.0
        %564 = vmatpush1.msra.mxu0 %v528
        %565 = vmatprep.subr.mxu0 0.0
        %566 = vmatpush1.msra.mxu0 %v527
        %567 = vmatprep.subr.mxu0 0.0
        %568 = vmatpush1.msra.mxu0 %v526
        %569 = vmatprep.subr.mxu0 0.0
        %570 = vmatpush1.msra.mxu0 %v525
        %571 = vmatprep.subr.mxu0 0.0
        %572 = vmatpush1.msra.mxu0 %v524
        %573 = vmatprep.subr.mxu0 0.0
        %574 = vmatpush1.msra.mxu0 %v523
        %575 = vmatprep.subr.mxu0 0.0
        %576 = vmatpush1.msra.mxu0 %v522
        %577 = vmatprep.subr.mxu0 0.0
        %578 = vmatpush1.msra.mxu0 %v521
        %579 = vmatprep.subr.mxu0 0.0
        %580 = vmatpush1.msra.mxu0 %v520
        %581 = vmatprep.subr.mxu0 0.0
        %582 = vmatpush1.msra.mxu0 %v519
        %583 = vmatprep.subr.mxu0 0.0
        %584 = vmatpush1.msra.mxu0 %v518
        %585 = vmatprep.subr.mxu0 0.0
        %586 = vmatpush2.msra.mxu0 %v549
        %587 = vmatprep.subr.mxu0 0.0
        %588 = vmatpush2.msra.mxu0 %v548
        %589 = vmatprep.subr.mxu0 0.0
        %590 = vmatpush2.msra.mxu0 %v547
        %591 = vmatprep.subr.mxu0 0.0
        %592 = vmatpush2.msra.mxu0 %v546
        %593 = vmatprep.subr.mxu0 0.0
        %594 = vmatpush2.msra.mxu0 %v545
        %595 = vmatprep.subr.mxu0 0.0
        %596 = vmatpush2.msra.mxu0 %v544
        %597 = vmatprep.subr.mxu0 0.0
        %598 = vmatpush2.msra.mxu0 %v543
        %599 = vmatprep.subr.mxu0 0.0
        %600 = vmatpush2.msra.mxu0 %v542
        %601 = vmatprep.subr.mxu0 0.0
        %602 = vmatpush2.msra.mxu0 %v541
        %603 = vmatprep.subr.mxu0 0.0
        %604 = vmatpush2.msra.mxu0 %v540
        %605 = vmatprep.subr.mxu0 0.0
        %606 = vmatpush2.msra.mxu0 %v539
        %607 = vmatprep.subr.mxu0 0.0
        %608 = vmatpush2.msra.mxu0 %v538
        %609 = vmatprep.subr.mxu0 0.0
        %610 = vmatpush2.msra.mxu0 %v537
        %611 = vmatprep.subr.mxu0 0.0
        %612 = vmatpush2.msra.mxu0 %v536
        %613 = vmatprep.subr.mxu0 0.0
        %614 = vmatpush2.msra.mxu0 %v535
        %615 = vmatprep.subr.mxu0 0.0
        %616 = vmatpush2.msra.mxu0 %v534
        %617 = vmatprep.mubr.f32.mxu0 %v551
        %618 = vmatmul.mubr.f32.gmra.mxu0 %v516
        %v619 = vpop.f32.mrf.mxu0
        %v620 = vadd.f32 0.0, %v619
        %v621 = vpop.f32.mrf.mxu0
        %622 = vdwg.mxu0
        %v623 = vadd.f32 %v499, %v620
        %s624 = scalar_lea.vmem %s256, 12
        %v625 = vld [vmem:[%s624] sm:$0xf]
        %627 = vset.pattern.permute.xlu0 0
        %628 = vperm.xlu0 %627, %v625
        %v629 = vpop.permute.xlu0 %628
        %v631 = vunpack.c.l.s4 839922192
        %v632 = vunpack.c.0.s8 %v631
        %v633 = vlaneseq
        %v634 = vshrl.u32 %v633, 7
        %v635 = vsub.s32 %v632, %v634
        %v636 = vrot.slane %v629, %v635
        %v638 = vmul.f32 %v261, %v636
        %s639 = scalar_lea.vmem %s3, 768
        %v640 = vld [vmem:[%s639] sm:$0xff]
        %v641 = vld [vmem:[%s639 + $0x8] sm:$0xff]
        %v642 = vld [vmem:[%s639 + $0x10] sm:$0xff]
        %v643 = vld [vmem:[%s639 + $0x18] sm:$0xff]
        %v644 = vld [vmem:[%s639 + $0x20] sm:$0xff]
        %v645 = vld [vmem:[%s639 + $0x28] sm:$0xff]
        %v646 = vld [vmem:[%s639 + $0x30] sm:$0xff]
        %v647 = vld [vmem:[%s639 + $0x38] sm:$0xff]
        %v648 = vld [vmem:[%s639 + $0x40] sm:$0xff]
        %v649 = vld [vmem:[%s639 + $0x48] sm:$0xff]
        %v650 = vld [vmem:[%s639 + $0x50] sm:$0xff]
        %v651 = vld [vmem:[%s639 + $0x58] sm:$0xff]
        %v652 = vld [vmem:[%s639 + $0x60] sm:$0xff]
        %v653 = vld [vmem:[%s639 + $0x68] sm:$0xff]
        %v654 = vld [vmem:[%s639 + $0x70] sm:$0xff]
        %v655 = vld [vmem:[%s639 + $0x78] sm:$0xff]
        %v656 = vld [vmem:[%s639 + $0x80] sm:$0xff]
        %v657 = vld [vmem:[%s639 + $0x88] sm:$0xff]
        %v658 = vld [vmem:[%s639 + $0x90] sm:$0xff]
        %v659 = vld [vmem:[%s639 + $0x98] sm:$0xff]
        %v660 = vld [vmem:[%s639 + $0xa0] sm:$0xff]
        %v661 = vld [vmem:[%s639 + $0xa8] sm:$0xff]
        %v662 = vld [vmem:[%s639 + $0xb0] sm:$0xff]
        %v663 = vld [vmem:[%s639 + $0xb8] sm:$0xff]
        %v664 = vld [vmem:[%s639 + $0xc0] sm:$0xff]
        %v665 = vld [vmem:[%s639 + $0xc8] sm:$0xff]
        %v666 = vld [vmem:[%s639 + $0xd0] sm:$0xff]
        %v667 = vld [vmem:[%s639 + $0xd8] sm:$0xff]
        %v668 = vld [vmem:[%s639 + $0xe0] sm:$0xff]
        %v669 = vld [vmem:[%s639 + $0xe8] sm:$0xff]
        %v670 = vld [vmem:[%s639 + $0xf0] sm:$0xff]
        %v671 = vld [vmem:[%s639 + $0xf8] sm:$0xff]
        %v673 = vcombine.high %v638, %v638
        %675 = vmatprep.subr.mxu0 0.0
        %676 = vmatpush1.msra.mxu0 %v655
        %677 = vmatprep.subr.mxu0 0.0
        %678 = vmatpush1.msra.mxu0 %v654
        %679 = vmatprep.subr.mxu0 0.0
        %680 = vmatpush1.msra.mxu0 %v653
        %681 = vmatprep.subr.mxu0 0.0
        %682 = vmatpush1.msra.mxu0 %v652
        %683 = vmatprep.subr.mxu0 0.0
        %684 = vmatpush1.msra.mxu0 %v651
        %685 = vmatprep.subr.mxu0 0.0
        %686 = vmatpush1.msra.mxu0 %v650
        %687 = vmatprep.subr.mxu0 0.0
        %688 = vmatpush1.msra.mxu0 %v649
        %689 = vmatprep.subr.mxu0 0.0
        %690 = vmatpush1.msra.mxu0 %v648
        %691 = vmatprep.subr.mxu0 0.0
        %692 = vmatpush1.msra.mxu0 %v647
        %693 = vmatprep.subr.mxu0 0.0
        %694 = vmatpush1.msra.mxu0 %v646
        %695 = vmatprep.subr.mxu0 0.0
        %696 = vmatpush1.msra.mxu0 %v645
        %697 = vmatprep.subr.mxu0 0.0
        %698 = vmatpush1.msra.mxu0 %v644
        %699 = vmatprep.subr.mxu0 0.0
        %700 = vmatpush1.msra.mxu0 %v643
        %701 = vmatprep.subr.mxu0 0.0
        %702 = vmatpush1.msra.mxu0 %v642
        %703 = vmatprep.subr.mxu0 0.0
        %704 = vmatpush1.msra.mxu0 %v641
        %705 = vmatprep.subr.mxu0 0.0
        %706 = vmatpush1.msra.mxu0 %v640
        %707 = vmatprep.subr.mxu0 0.0
        %708 = vmatpush2.msra.mxu0 %v671
        %709 = vmatprep.subr.mxu0 0.0
        %710 = vmatpush2.msra.mxu0 %v670
        %711 = vmatprep.subr.mxu0 0.0
        %712 = vmatpush2.msra.mxu0 %v669
        %713 = vmatprep.subr.mxu0 0.0
        %714 = vmatpush2.msra.mxu0 %v668
        %715 = vmatprep.subr.mxu0 0.0
        %716 = vmatpush2.msra.mxu0 %v667
        %717 = vmatprep.subr.mxu0 0.0
        %718 = vmatpush2.msra.mxu0 %v666
        %719 = vmatprep.subr.mxu0 0.0
        %720 = vmatpush2.msra.mxu0 %v665
        %721 = vmatprep.subr.mxu0 0.0
        %722 = vmatpush2.msra.mxu0 %v664
        %723 = vmatprep.subr.mxu0 0.0
        %724 = vmatpush2.msra.mxu0 %v663
        %725 = vmatprep.subr.mxu0 0.0
        %726 = vmatpush2.msra.mxu0 %v662
        %727 = vmatprep.subr.mxu0 0.0
        %728 = vmatpush2.msra.mxu0 %v661
        %729 = vmatprep.subr.mxu0 0.0
        %730 = vmatpush2.msra.mxu0 %v660
        %731 = vmatprep.subr.mxu0 0.0
        %732 = vmatpush2.msra.mxu0 %v659
        %733 = vmatprep.subr.mxu0 0.0
        %734 = vmatpush2.msra.mxu0 %v658
        %735 = vmatprep.subr.mxu0 0.0
        %736 = vmatpush2.msra.mxu0 %v657
        %737 = vmatprep.subr.mxu0 0.0
        %738 = vmatpush2.msra.mxu0 %v656
        %739 = vmatprep.mubr.f32.mxu0 %v673
        %740 = vmatmul.mubr.f32.gmra.mxu0 %v638
        %v741 = vpop.f32.mrf.mxu0
        %v742 = vadd.f32 0.0, %v741
        %v743 = vpop.f32.mrf.mxu0
        %744 = vdwg.mxu0
        %v745 = vadd.f32 %v623, %v742
        %s746 = scalar_lea.vmem %s256, 16
        %v747 = vld [vmem:[%s746] sm:$0xf]
        %749 = vset.pattern.permute.xlu0 0
        %750 = vperm.xlu0 %749, %v747
        %v751 = vpop.permute.xlu0 %750
        %v753 = vunpack.c.l.s4 839922192
        %v754 = vunpack.c.0.s8 %v753
        %v755 = vlaneseq
        %v756 = vshrl.u32 %v755, 7
        %v757 = vsub.s32 %v754, %v756
        %v758 = vrot.slane %v751, %v757
        %v760 = vmul.f32 %v261, %v758
        %s761 = scalar_lea.vmem %s3, 1024
        %v762 = vld [vmem:[%s761] sm:$0xff]
        %v763 = vld [vmem:[%s761 + $0x8] sm:$0xff]
        %v764 = vld [vmem:[%s761 + $0x10] sm:$0xff]
        %v765 = vld [vmem:[%s761 + $0x18] sm:$0xff]
        %v766 = vld [vmem:[%s761 + $0x20] sm:$0xff]
        %v767 = vld [vmem:[%s761 + $0x28] sm:$0xff]
        %v768 = vld [vmem:[%s761 + $0x30] sm:$0xff]
        %v769 = vld [vmem:[%s761 + $0x38] sm:$0xff]
        %v770 = vld [vmem:[%s761 + $0x40] sm:$0xff]
        %v771 = vld [vmem:[%s761 + $0x48] sm:$0xff]
        %v772 = vld [vmem:[%s761 + $0x50] sm:$0xff]
        %v773 = vld [vmem:[%s761 + $0x58] sm:$0xff]
        %v774 = vld [vmem:[%s761 + $0x60] sm:$0xff]
        %v775 = vld [vmem:[%s761 + $0x68] sm:$0xff]
        %v776 = vld [vmem:[%s761 + $0x70] sm:$0xff]
        %v777 = vld [vmem:[%s761 + $0x78] sm:$0xff]
        %v778 = vld [vmem:[%s761 + $0x80] sm:$0xff]
        %v779 = vld [vmem:[%s761 + $0x88] sm:$0xff]
        %v780 = vld [vmem:[%s761 + $0x90] sm:$0xff]
        %v781 = vld [vmem:[%s761 + $0x98] sm:$0xff]
        %v782 = vld [vmem:[%s761 + $0xa0] sm:$0xff]
        %v783 = vld [vmem:[%s761 + $0xa8] sm:$0xff]
        %v784 = vld [vmem:[%s761 + $0xb0] sm:$0xff]
        %v785 = vld [vmem:[%s761 + $0xb8] sm:$0xff]
        %v786 = vld [vmem:[%s761 + $0xc0] sm:$0xff]
        %v787 = vld [vmem:[%s761 + $0xc8] sm:$0xff]
        %v788 = vld [vmem:[%s761 + $0xd0] sm:$0xff]
        %v789 = vld [vmem:[%s761 + $0xd8] sm:$0xff]
        %v790 = vld [vmem:[%s761 + $0xe0] sm:$0xff]
        %v791 = vld [vmem:[%s761 + $0xe8] sm:$0xff]
        %v792 = vld [vmem:[%s761 + $0xf0] sm:$0xff]
        %v793 = vld [vmem:[%s761 + $0xf8] sm:$0xff]
        %v795 = vcombine.high %v760, %v760
        %797 = vmatprep.subr.mxu0 0.0
        %798 = vmatpush1.msra.mxu0 %v777
        %799 = vmatprep.subr.mxu0 0.0
        %800 = vmatpush1.msra.mxu0 %v776
        %801 = vmatprep.subr.mxu0 0.0
        %802 = vmatpush1.msra.mxu0 %v775
        %803 = vmatprep.subr.mxu0 0.0
        %804 = vmatpush1.msra.mxu0 %v774
        %805 = vmatprep.subr.mxu0 0.0
        %806 = vmatpush1.msra.mxu0 %v773
        %807 = vmatprep.subr.mxu0 0.0
        %808 = vmatpush1.msra.mxu0 %v772
        %809 = vmatprep.subr.mxu0 0.0
        %810 = vmatpush1.msra.mxu0 %v771
        %811 = vmatprep.subr.mxu0 0.0
        %812 = vmatpush1.msra.mxu0 %v770
        %813 = vmatprep.subr.mxu0 0.0
        %814 = vmatpush1.msra.mxu0 %v769
        %815 = vmatprep.subr.mxu0 0.0
        %816 = vmatpush1.msra.mxu0 %v768
        %817 = vmatprep.subr.mxu0 0.0
        %818 = vmatpush1.msra.mxu0 %v767
        %819 = vmatprep.subr.mxu0 0.0
        %820 = vmatpush1.msra.mxu0 %v766
        %821 = vmatprep.subr.mxu0 0.0
        %822 = vmatpush1.msra.mxu0 %v765
        %823 = vmatprep.subr.mxu0 0.0
        %824 = vmatpush1.msra.mxu0 %v764
        %825 = vmatprep.subr.mxu0 0.0
        %826 = vmatpush1.msra.mxu0 %v763
        %827 = vmatprep.subr.mxu0 0.0
        %828 = vmatpush1.msra.mxu0 %v762
        %829 = vmatprep.subr.mxu0 0.0
        %830 = vmatpush2.msra.mxu0 %v793
        %831 = vmatprep.subr.mxu0 0.0
        %832 = vmatpush2.msra.mxu0 %v792
        %833 = vmatprep.subr.mxu0 0.0
        %834 = vmatpush2.msra.mxu0 %v791
        %835 = vmatprep.subr.mxu0 0.0
        %836 = vmatpush2.msra.mxu0 %v790
        %837 = vmatprep.subr.mxu0 0.0
        %838 = vmatpush2.msra.mxu0 %v789
        %839 = vmatprep.subr.mxu0 0.0
        %840 = vmatpush2.msra.mxu0 %v788
        %841 = vmatprep.subr.mxu0 0.0
        %842 = vmatpush2.msra.mxu0 %v787
        %843 = vmatprep.subr.mxu0 0.0
        %844 = vmatpush2.msra.mxu0 %v786
        %845 = vmatprep.subr.mxu0 0.0
        %846 = vmatpush2.msra.mxu0 %v785
        %847 = vmatprep.subr.mxu0 0.0
        %848 = vmatpush2.msra.mxu0 %v784
        %849 = vmatprep.subr.mxu0 0.0
        %850 = vmatpush2.msra.mxu0 %v783
        %851 = vmatprep.subr.mxu0 0.0
        %852 = vmatpush2.msra.mxu0 %v782
        %853 = vmatprep.subr.mxu0 0.0
        %854 = vmatpush2.msra.mxu0 %v781
        %855 = vmatprep.subr.mxu0 0.0
        %856 = vmatpush2.msra.mxu0 %v780
        %857 = vmatprep.subr.mxu0 0.0
        %858 = vmatpush2.msra.mxu0 %v779
        %859 = vmatprep.subr.mxu0 0.0
        %860 = vmatpush2.msra.mxu0 %v778
        %861 = vmatprep.mubr.f32.mxu0 %v795
        %862 = vmatmul.mubr.f32.gmra.mxu0 %v760
        %v863 = vpop.f32.mrf.mxu0
        %v864 = vadd.f32 0.0, %v863
        %v865 = vpop.f32.mrf.mxu0
        %866 = vdwg.mxu0
        %v867 = vadd.f32 %v745, %v864
        %s868 = scalar_lea.vmem %s256, 20
        %v869 = vld [vmem:[%s868] sm:$0xf]
        %871 = vset.pattern.permute.xlu0 0
        %872 = vperm.xlu0 %871, %v869
        %v873 = vpop.permute.xlu0 %872
        %v875 = vunpack.c.l.s4 839922192
        %v876 = vunpack.c.0.s8 %v875
        %v877 = vlaneseq
        %v878 = vshrl.u32 %v877, 7
        %v879 = vsub.s32 %v876, %v878
        %v880 = vrot.slane %v873, %v879
        %v882 = vmul.f32 %v261, %v880
        %s883 = scalar_lea.vmem %s3, 1280
        %v884 = vld [vmem:[%s883] sm:$0xff]
        %v885 = vld [vmem:[%s883 + $0x8] sm:$0xff]
        %v886 = vld [vmem:[%s883 + $0x10] sm:$0xff]
        %v887 = vld [vmem:[%s883 + $0x18] sm:$0xff]
        %v888 = vld [vmem:[%s883 + $0x20] sm:$0xff]
        %v889 = vld [vmem:[%s883 + $0x28] sm:$0xff]
        %v890 = vld [vmem:[%s883 + $0x30] sm:$0xff]
        %v891 = vld [vmem:[%s883 + $0x38] sm:$0xff]
        %v892 = vld [vmem:[%s883 + $0x40] sm:$0xff]
        %v893 = vld [vmem:[%s883 + $0x48] sm:$0xff]
        %v894 = vld [vmem:[%s883 + $0x50] sm:$0xff]
        %v895 = vld [vmem:[%s883 + $0x58] sm:$0xff]
        %v896 = vld [vmem:[%s883 + $0x60] sm:$0xff]
        %v897 = vld [vmem:[%s883 + $0x68] sm:$0xff]
        %v898 = vld [vmem:[%s883 + $0x70] sm:$0xff]
        %v899 = vld [vmem:[%s883 + $0x78] sm:$0xff]
        %v900 = vld [vmem:[%s883 + $0x80] sm:$0xff]
        %v901 = vld [vmem:[%s883 + $0x88] sm:$0xff]
        %v902 = vld [vmem:[%s883 + $0x90] sm:$0xff]
        %v903 = vld [vmem:[%s883 + $0x98] sm:$0xff]
        %v904 = vld [vmem:[%s883 + $0xa0] sm:$0xff]
        %v905 = vld [vmem:[%s883 + $0xa8] sm:$0xff]
        %v906 = vld [vmem:[%s883 + $0xb0] sm:$0xff]
        %v907 = vld [vmem:[%s883 + $0xb8] sm:$0xff]
        %v908 = vld [vmem:[%s883 + $0xc0] sm:$0xff]
        %v909 = vld [vmem:[%s883 + $0xc8] sm:$0xff]
        %v910 = vld [vmem:[%s883 + $0xd0] sm:$0xff]
        %v911 = vld [vmem:[%s883 + $0xd8] sm:$0xff]
        %v912 = vld [vmem:[%s883 + $0xe0] sm:$0xff]
        %v913 = vld [vmem:[%s883 + $0xe8] sm:$0xff]
        %v914 = vld [vmem:[%s883 + $0xf0] sm:$0xff]
        %v915 = vld [vmem:[%s883 + $0xf8] sm:$0xff]
        %v917 = vcombine.high %v882, %v882
        %919 = vmatprep.subr.mxu0 0.0
        %920 = vmatpush1.msra.mxu0 %v899
        %921 = vmatprep.subr.mxu0 0.0
        %922 = vmatpush1.msra.mxu0 %v898
        %923 = vmatprep.subr.mxu0 0.0
        %924 = vmatpush1.msra.mxu0 %v897
        %925 = vmatprep.subr.mxu0 0.0
        %926 = vmatpush1.msra.mxu0 %v896
        %927 = vmatprep.subr.mxu0 0.0
        %928 = vmatpush1.msra.mxu0 %v895
        %929 = vmatprep.subr.mxu0 0.0
        %930 = vmatpush1.msra.mxu0 %v894
        %931 = vmatprep.subr.mxu0 0.0
        %932 = vmatpush1.msra.mxu0 %v893
        %933 = vmatprep.subr.mxu0 0.0
        %934 = vmatpush1.msra.mxu0 %v892
        %935 = vmatprep.subr.mxu0 0.0
        %936 = vmatpush1.msra.mxu0 %v891
        %937 = vmatprep.subr.mxu0 0.0
        %938 = vmatpush1.msra.mxu0 %v890
        %939 = vmatprep.subr.mxu0 0.0
        %940 = vmatpush1.msra.mxu0 %v889
        %941 = vmatprep.subr.mxu0 0.0
        %942 = vmatpush1.msra.mxu0 %v888
        %943 = vmatprep.subr.mxu0 0.0
        %944 = vmatpush1.msra.mxu0 %v887
        %945 = vmatprep.subr.mxu0 0.0
        %946 = vmatpush1.msra.mxu0 %v886
        %947 = vmatprep.subr.mxu0 0.0
        %948 = vmatpush1.msra.mxu0 %v885
        %949 = vmatprep.subr.mxu0 0.0
        %950 = vmatpush1.msra.mxu0 %v884
        %951 = vmatprep.subr.mxu0 0.0
        %952 = vmatpush2.msra.mxu0 %v915
        %953 = vmatprep.subr.mxu0 0.0
        %954 = vmatpush2.msra.mxu0 %v914
        %955 = vmatprep.subr.mxu0 0.0
        %956 = vmatpush2.msra.mxu0 %v913
        %957 = vmatprep.subr.mxu0 0.0
        %958 = vmatpush2.msra.mxu0 %v912
        %959 = vmatprep.subr.mxu0 0.0
        %960 = vmatpush2.msra.mxu0 %v911
        %961 = vmatprep.subr.mxu0 0.0
        %962 = vmatpush2.msra.mxu0 %v910
        %963 = vmatprep.subr.mxu0 0.0
        %964 = vmatpush2.msra.mxu0 %v909
        %965 = vmatprep.subr.mxu0 0.0
        %966 = vmatpush2.msra.mxu0 %v908
        %967 = vmatprep.subr.mxu0 0.0
        %968 = vmatpush2.msra.mxu0 %v907
        %969 = vmatprep.subr.mxu0 0.0
        %970 = vmatpush2.msra.mxu0 %v906
        %971 = vmatprep.subr.mxu0 0.0
        %972 = vmatpush2.msra.mxu0 %v905
        %973 = vmatprep.subr.mxu0 0.0
        %974 = vmatpush2.msra.mxu0 %v904
        %975 = vmatprep.subr.mxu0 0.0
        %976 = vmatpush2.msra.mxu0 %v903
        %977 = vmatprep.subr.mxu0 0.0
        %978 = vmatpush2.msra.mxu0 %v902
        %979 = vmatprep.subr.mxu0 0.0
        %980 = vmatpush2.msra.mxu0 %v901
        %981 = vmatprep.subr.mxu0 0.0
        %982 = vmatpush2.msra.mxu0 %v900
        %983 = vmatprep.mubr.f32.mxu0 %v917
        %984 = vmatmul.mubr.f32.gmra.mxu0 %v882
        %v985 = vpop.f32.mrf.mxu0
        %v986 = vadd.f32 0.0, %v985
        %v987 = vpop.f32.mrf.mxu0
        %988 = vdwg.mxu0
        %v989 = vadd.f32 %v867, %v986
        %s990 = scalar_lea.vmem %s256, 24
        %v991 = vld [vmem:[%s990] sm:$0xf]
        %993 = vset.pattern.permute.xlu0 0
        %994 = vperm.xlu0 %993, %v991
        %v995 = vpop.permute.xlu0 %994
        %v997 = vunpack.c.l.s4 839922192
        %v998 = vunpack.c.0.s8 %v997
        %v999 = vlaneseq
        %v1000 = vshrl.u32 %v999, 7
        %v1001 = vsub.s32 %v998, %v1000
        %v1002 = vrot.slane %v995, %v1001
        %v1004 = vmul.f32 %v261, %v1002
        %s1005 = scalar_lea.vmem %s3, 1536
        %v1006 = vld [vmem:[%s1005] sm:$0xff]
        %v1007 = vld [vmem:[%s1005 + $0x8] sm:$0xff]
        %v1008 = vld [vmem:[%s1005 + $0x10] sm:$0xff]
        %v1009 = vld [vmem:[%s1005 + $0x18] sm:$0xff]
        %v1010 = vld [vmem:[%s1005 + $0x20] sm:$0xff]
        %v1011 = vld [vmem:[%s1005 + $0x28] sm:$0xff]
        %v1012 = vld [vmem:[%s1005 + $0x30] sm:$0xff]
        %v1013 = vld [vmem:[%s1005 + $0x38] sm:$0xff]
        %v1014 = vld [vmem:[%s1005 + $0x40] sm:$0xff]
        %v1015 = vld [vmem:[%s1005 + $0x48] sm:$0xff]
        %v1016 = vld [vmem:[%s1005 + $0x50] sm:$0xff]
        %v1017 = vld [vmem:[%s1005 + $0x58] sm:$0xff]
        %v1018 = vld [vmem:[%s1005 + $0x60] sm:$0xff]
        %v1019 = vld [vmem:[%s1005 + $0x68] sm:$0xff]
        %v1020 = vld [vmem:[%s1005 + $0x70] sm:$0xff]
        %v1021 = vld [vmem:[%s1005 + $0x78] sm:$0xff]
        %v1022 = vld [vmem:[%s1005 + $0x80] sm:$0xff]
        %v1023 = vld [vmem:[%s1005 + $0x88] sm:$0xff]
        %v1024 = vld [vmem:[%s1005 + $0x90] sm:$0xff]
        %v1025 = vld [vmem:[%s1005 + $0x98] sm:$0xff]
        %v1026 = vld [vmem:[%s1005 + $0xa0] sm:$0xff]
        %v1027 = vld [vmem:[%s1005 + $0xa8] sm:$0xff]
        %v1028 = vld [vmem:[%s1005 + $0xb0] sm:$0xff]
        %v1029 = vld [vmem:[%s1005 + $0xb8] sm:$0xff]
        %v1030 = vld [vmem:[%s1005 + $0xc0] sm:$0xff]
        %v1031 = vld [vmem:[%s1005 + $0xc8] sm:$0xff]
        %v1032 = vld [vmem:[%s1005 + $0xd0] sm:$0xff]
        %v1033 = vld [vmem:[%s1005 + $0xd8] sm:$0xff]
        %v1034 = vld [vmem:[%s1005 + $0xe0] sm:$0xff]
        %v1035 = vld [vmem:[%s1005 + $0xe8] sm:$0xff]
        %v1036 = vld [vmem:[%s1005 + $0xf0] sm:$0xff]
        %v1037 = vld [vmem:[%s1005 + $0xf8] sm:$0xff]
        %v1039 = vcombine.high %v1004, %v1004
        %1041 = vmatprep.subr.mxu0 0.0
        %1042 = vmatpush1.msra.mxu0 %v1021
        %1043 = vmatprep.subr.mxu0 0.0
        %1044 = vmatpush1.msra.mxu0 %v1020
        %1045 = vmatprep.subr.mxu0 0.0
        %1046 = vmatpush1.msra.mxu0 %v1019
        %1047 = vmatprep.subr.mxu0 0.0
        %1048 = vmatpush1.msra.mxu0 %v1018
        %1049 = vmatprep.subr.mxu0 0.0
        %1050 = vmatpush1.msra.mxu0 %v1017
        %1051 = vmatprep.subr.mxu0 0.0
        %1052 = vmatpush1.msra.mxu0 %v1016
        %1053 = vmatprep.subr.mxu0 0.0
        %1054 = vmatpush1.msra.mxu0 %v1015
        %1055 = vmatprep.subr.mxu0 0.0
        %1056 = vmatpush1.msra.mxu0 %v1014
        %1057 = vmatprep.subr.mxu0 0.0
        %1058 = vmatpush1.msra.mxu0 %v1013
        %1059 = vmatprep.subr.mxu0 0.0
        %1060 = vmatpush1.msra.mxu0 %v1012
        %1061 = vmatprep.subr.mxu0 0.0
        %1062 = vmatpush1.msra.mxu0 %v1011
        %1063 = vmatprep.subr.mxu0 0.0
        %1064 = vmatpush1.msra.mxu0 %v1010
        %1065 = vmatprep.subr.mxu0 0.0
        %1066 = vmatpush1.msra.mxu0 %v1009
        %1067 = vmatprep.subr.mxu0 0.0
        %1068 = vmatpush1.msra.mxu0 %v1008
        %1069 = vmatprep.subr.mxu0 0.0
        %1070 = vmatpush1.msra.mxu0 %v1007
        %1071 = vmatprep.subr.mxu0 0.0
        %1072 = vmatpush1.msra.mxu0 %v1006
        %1073 = vmatprep.subr.mxu0 0.0
        %1074 = vmatpush2.msra.mxu0 %v1037
        %1075 = vmatprep.subr.mxu0 0.0
        %1076 = vmatpush2.msra.mxu0 %v1036
        %1077 = vmatprep.subr.mxu0 0.0
        %1078 = vmatpush2.msra.mxu0 %v1035
        %1079 = vmatprep.subr.mxu0 0.0
        %1080 = vmatpush2.msra.mxu0 %v1034
        %1081 = vmatprep.subr.mxu0 0.0
        %1082 = vmatpush2.msra.mxu0 %v1033
        %1083 = vmatprep.subr.mxu0 0.0
        %1084 = vmatpush2.msra.mxu0 %v1032
        %1085 = vmatprep.subr.mxu0 0.0
        %1086 = vmatpush2.msra.mxu0 %v1031
        %1087 = vmatprep.subr.mxu0 0.0
        %1088 = vmatpush2.msra.mxu0 %v1030
        %1089 = vmatprep.subr.mxu0 0.0
        %1090 = vmatpush2.msra.mxu0 %v1029
        %1091 = vmatprep.subr.mxu0 0.0
        %1092 = vmatpush2.msra.mxu0 %v1028
        %1093 = vmatprep.subr.mxu0 0.0
        %1094 = vmatpush2.msra.mxu0 %v1027
        %1095 = vmatprep.subr.mxu0 0.0
        %1096 = vmatpush2.msra.mxu0 %v1026
        %1097 = vmatprep.subr.mxu0 0.0
        %1098 = vmatpush2.msra.mxu0 %v1025
        %1099 = vmatprep.subr.mxu0 0.0
        %1100 = vmatpush2.msra.mxu0 %v1024
        %1101 = vmatprep.subr.mxu0 0.0
        %1102 = vmatpush2.msra.mxu0 %v1023
        %1103 = vmatprep.subr.mxu0 0.0
        %1104 = vmatpush2.msra.mxu0 %v1022
        %1105 = vmatprep.mubr.f32.mxu0 %v1039
        %1106 = vmatmul.mubr.f32.gmra.mxu0 %v1004
        %v1107 = vpop.f32.mrf.mxu0
        %v1108 = vadd.f32 0.0, %v1107
        %v1109 = vpop.f32.mrf.mxu0
        %1110 = vdwg.mxu0
        %v1111 = vadd.f32 %v989, %v1108
        %s1112 = scalar_lea.vmem %s256, 28
        %v1113 = vld [vmem:[%s1112] sm:$0xf]
        %1115 = vset.pattern.permute.xlu0 0
        %1116 = vperm.xlu0 %1115, %v1113
        %v1117 = vpop.permute.xlu0 %1116
        %v1119 = vunpack.c.l.s4 839922192
        %v1120 = vunpack.c.0.s8 %v1119
        %v1121 = vlaneseq
        %v1122 = vshrl.u32 %v1121, 7
        %v1123 = vsub.s32 %v1120, %v1122
        %v1124 = vrot.slane %v1117, %v1123
        %v1126 = vmul.f32 %v261, %v1124
        %s1127 = scalar_lea.vmem %s3, 1792
        %v1128 = vld [vmem:[%s1127] sm:$0xff]
        %v1129 = vld [vmem:[%s1127 + $0x8] sm:$0xff]
        %v1130 = vld [vmem:[%s1127 + $0x10] sm:$0xff]
        %v1131 = vld [vmem:[%s1127 + $0x18] sm:$0xff]
        %v1132 = vld [vmem:[%s1127 + $0x20] sm:$0xff]
        %v1133 = vld [vmem:[%s1127 + $0x28] sm:$0xff]
        %v1134 = vld [vmem:[%s1127 + $0x30] sm:$0xff]
        %v1135 = vld [vmem:[%s1127 + $0x38] sm:$0xff]
        %v1136 = vld [vmem:[%s1127 + $0x40] sm:$0xff]
        %v1137 = vld [vmem:[%s1127 + $0x48] sm:$0xff]
        %v1138 = vld [vmem:[%s1127 + $0x50] sm:$0xff]
        %v1139 = vld [vmem:[%s1127 + $0x58] sm:$0xff]
        %v1140 = vld [vmem:[%s1127 + $0x60] sm:$0xff]
        %v1141 = vld [vmem:[%s1127 + $0x68] sm:$0xff]
        %v1142 = vld [vmem:[%s1127 + $0x70] sm:$0xff]
        %v1143 = vld [vmem:[%s1127 + $0x78] sm:$0xff]
        %v1144 = vld [vmem:[%s1127 + $0x80] sm:$0xff]
        %v1145 = vld [vmem:[%s1127 + $0x88] sm:$0xff]
        %v1146 = vld [vmem:[%s1127 + $0x90] sm:$0xff]
        %v1147 = vld [vmem:[%s1127 + $0x98] sm:$0xff]
        %v1148 = vld [vmem:[%s1127 + $0xa0] sm:$0xff]
        %v1149 = vld [vmem:[%s1127 + $0xa8] sm:$0xff]
        %v1150 = vld [vmem:[%s1127 + $0xb0] sm:$0xff]
        %v1151 = vld [vmem:[%s1127 + $0xb8] sm:$0xff]
        %v1152 = vld [vmem:[%s1127 + $0xc0] sm:$0xff]
        %v1153 = vld [vmem:[%s1127 + $0xc8] sm:$0xff]
        %v1154 = vld [vmem:[%s1127 + $0xd0] sm:$0xff]
        %v1155 = vld [vmem:[%s1127 + $0xd8] sm:$0xff]
        %v1156 = vld [vmem:[%s1127 + $0xe0] sm:$0xff]
        %v1157 = vld [vmem:[%s1127 + $0xe8] sm:$0xff]
        %v1158 = vld [vmem:[%s1127 + $0xf0] sm:$0xff]
        %v1159 = vld [vmem:[%s1127 + $0xf8] sm:$0xff]
        %v1161 = vcombine.high %v1126, %v1126
        %1163 = vmatprep.subr.mxu0 0.0
        %1164 = vmatpush1.msra.mxu0 %v1143
        %1165 = vmatprep.subr.mxu0 0.0
        %1166 = vmatpush1.msra.mxu0 %v1142
        %1167 = vmatprep.subr.mxu0 0.0
        %1168 = vmatpush1.msra.mxu0 %v1141
        %1169 = vmatprep.subr.mxu0 0.0
        %1170 = vmatpush1.msra.mxu0 %v1140
        %1171 = vmatprep.subr.mxu0 0.0
        %1172 = vmatpush1.msra.mxu0 %v1139
        %1173 = vmatprep.subr.mxu0 0.0
        %1174 = vmatpush1.msra.mxu0 %v1138
        %1175 = vmatprep.subr.mxu0 0.0
        %1176 = vmatpush1.msra.mxu0 %v1137
        %1177 = vmatprep.subr.mxu0 0.0
        %1178 = vmatpush1.msra.mxu0 %v1136
        %1179 = vmatprep.subr.mxu0 0.0
        %1180 = vmatpush1.msra.mxu0 %v1135
        %1181 = vmatprep.subr.mxu0 0.0
        %1182 = vmatpush1.msra.mxu0 %v1134
        %1183 = vmatprep.subr.mxu0 0.0
        %1184 = vmatpush1.msra.mxu0 %v1133
        %1185 = vmatprep.subr.mxu0 0.0
        %1186 = vmatpush1.msra.mxu0 %v1132
        %1187 = vmatprep.subr.mxu0 0.0
        %1188 = vmatpush1.msra.mxu0 %v1131
        %1189 = vmatprep.subr.mxu0 0.0
        %1190 = vmatpush1.msra.mxu0 %v1130
        %1191 = vmatprep.subr.mxu0 0.0
        %1192 = vmatpush1.msra.mxu0 %v1129
        %1193 = vmatprep.subr.mxu0 0.0
        %1194 = vmatpush1.msra.mxu0 %v1128
        %1195 = vmatprep.subr.mxu0 0.0
        %1196 = vmatpush2.msra.mxu0 %v1159
        %1197 = vmatprep.subr.mxu0 0.0
        %1198 = vmatpush2.msra.mxu0 %v1158
        %1199 = vmatprep.subr.mxu0 0.0
        %1200 = vmatpush2.msra.mxu0 %v1157
        %1201 = vmatprep.subr.mxu0 0.0
        %1202 = vmatpush2.msra.mxu0 %v1156
        %1203 = vmatprep.subr.mxu0 0.0
        %1204 = vmatpush2.msra.mxu0 %v1155
        %1205 = vmatprep.subr.mxu0 0.0
        %1206 = vmatpush2.msra.mxu0 %v1154
        %1207 = vmatprep.subr.mxu0 0.0
        %1208 = vmatpush2.msra.mxu0 %v1153
        %1209 = vmatprep.subr.mxu0 0.0
        %1210 = vmatpush2.msra.mxu0 %v1152
        %1211 = vmatprep.subr.mxu0 0.0
        %1212 = vmatpush2.msra.mxu0 %v1151
        %1213 = vmatprep.subr.mxu0 0.0
        %1214 = vmatpush2.msra.mxu0 %v1150
        %1215 = vmatprep.subr.mxu0 0.0
        %1216 = vmatpush2.msra.mxu0 %v1149
        %1217 = vmatprep.subr.mxu0 0.0
        %1218 = vmatpush2.msra.mxu0 %v1148
        %1219 = vmatprep.subr.mxu0 0.0
        %1220 = vmatpush2.msra.mxu0 %v1147
        %1221 = vmatprep.subr.mxu0 0.0
        %1222 = vmatpush2.msra.mxu0 %v1146
        %1223 = vmatprep.subr.mxu0 0.0
        %1224 = vmatpush2.msra.mxu0 %v1145
        %1225 = vmatprep.subr.mxu0 0.0
        %1226 = vmatpush2.msra.mxu0 %v1144
        %1227 = vmatprep.mubr.f32.mxu0 %v1161
        %1228 = vmatmul.mubr.f32.gmra.mxu0 %v1126
        %v1229 = vpop.f32.mrf.mxu0
        %v1230 = vadd.f32 0.0, %v1229
        %v1231 = vpop.f32.mrf.mxu0
        %1232 = vdwg.mxu0
        %v1233 = vadd.f32 %v1111, %v1230
        %s1234 = scalar_lea.vmem %s256, 32
        %v1235 = vld [vmem:[%s1234] sm:$0xf]
        %1237 = vset.pattern.permute.xlu0 0
        %1238 = vperm.xlu0 %1237, %v1235
        %v1239 = vpop.permute.xlu0 %1238
        %v1241 = vunpack.c.l.s4 839922192
        %v1242 = vunpack.c.0.s8 %v1241
        %v1243 = vlaneseq
        %v1244 = vshrl.u32 %v1243, 7
        %v1245 = vsub.s32 %v1242, %v1244
        %v1246 = vrot.slane %v1239, %v1245
        %v1248 = vmul.f32 %v261, %v1246
        %s1249 = scalar_lea.vmem %s3, 2048
        %v1250 = vld [vmem:[%s1249] sm:$0xff]
        %v1251 = vld [vmem:[%s1249 + $0x8] sm:$0xff]
        %v1252 = vld [vmem:[%s1249 + $0x10] sm:$0xff]
        %v1253 = vld [vmem:[%s1249 + $0x18] sm:$0xff]
        %v1254 = vld [vmem:[%s1249 + $0x20] sm:$0xff]
        %v1255 = vld [vmem:[%s1249 + $0x28] sm:$0xff]
        %v1256 = vld [vmem:[%s1249 + $0x30] sm:$0xff]
        %v1257 = vld [vmem:[%s1249 + $0x38] sm:$0xff]
        %v1258 = vld [vmem:[%s1249 + $0x40] sm:$0xff]
        %v1259 = vld [vmem:[%s1249 + $0x48] sm:$0xff]
        %v1260 = vld [vmem:[%s1249 + $0x50] sm:$0xff]
        %v1261 = vld [vmem:[%s1249 + $0x58] sm:$0xff]
        %v1262 = vld [vmem:[%s1249 + $0x60] sm:$0xff]
        %v1263 = vld [vmem:[%s1249 + $0x68] sm:$0xff]
        %v1264 = vld [vmem:[%s1249 + $0x70] sm:$0xff]
        %v1265 = vld [vmem:[%s1249 + $0x78] sm:$0xff]
        %v1266 = vld [vmem:[%s1249 + $0x80] sm:$0xff]
        %v1267 = vld [vmem:[%s1249 + $0x88] sm:$0xff]
        %v1268 = vld [vmem:[%s1249 + $0x90] sm:$0xff]
        %v1269 = vld [vmem:[%s1249 + $0x98] sm:$0xff]
        %v1270 = vld [vmem:[%s1249 + $0xa0] sm:$0xff]
        %v1271 = vld [vmem:[%s1249 + $0xa8] sm:$0xff]
        %v1272 = vld [vmem:[%s1249 + $0xb0] sm:$0xff]
        %v1273 = vld [vmem:[%s1249 + $0xb8] sm:$0xff]
        %v1274 = vld [vmem:[%s1249 + $0xc0] sm:$0xff]
        %v1275 = vld [vmem:[%s1249 + $0xc8] sm:$0xff]
        %v1276 = vld [vmem:[%s1249 + $0xd0] sm:$0xff]
        %v1277 = vld [vmem:[%s1249 + $0xd8] sm:$0xff]
        %v1278 = vld [vmem:[%s1249 + $0xe0] sm:$0xff]
        %v1279 = vld [vmem:[%s1249 + $0xe8] sm:$0xff]
        %v1280 = vld [vmem:[%s1249 + $0xf0] sm:$0xff]
        %v1281 = vld [vmem:[%s1249 + $0xf8] sm:$0xff]
        %v1283 = vcombine.high %v1248, %v1248
        %1285 = vmatprep.subr.mxu0 0.0
        %1286 = vmatpush1.msra.mxu0 %v1265
        %1287 = vmatprep.subr.mxu0 0.0
        %1288 = vmatpush1.msra.mxu0 %v1264
        %1289 = vmatprep.subr.mxu0 0.0
        %1290 = vmatpush1.msra.mxu0 %v1263
        %1291 = vmatprep.subr.mxu0 0.0
        %1292 = vmatpush1.msra.mxu0 %v1262
        %1293 = vmatprep.subr.mxu0 0.0
        %1294 = vmatpush1.msra.mxu0 %v1261
        %1295 = vmatprep.subr.mxu0 0.0
        %1296 = vmatpush1.msra.mxu0 %v1260
        %1297 = vmatprep.subr.mxu0 0.0
        %1298 = vmatpush1.msra.mxu0 %v1259
        %1299 = vmatprep.subr.mxu0 0.0
        %1300 = vmatpush1.msra.mxu0 %v1258
        %1301 = vmatprep.subr.mxu0 0.0
        %1302 = vmatpush1.msra.mxu0 %v1257
        %1303 = vmatprep.subr.mxu0 0.0
        %1304 = vmatpush1.msra.mxu0 %v1256
        %1305 = vmatprep.subr.mxu0 0.0
        %1306 = vmatpush1.msra.mxu0 %v1255
        %1307 = vmatprep.subr.mxu0 0.0
        %1308 = vmatpush1.msra.mxu0 %v1254
        %1309 = vmatprep.subr.mxu0 0.0
        %1310 = vmatpush1.msra.mxu0 %v1253
        %1311 = vmatprep.subr.mxu0 0.0
        %1312 = vmatpush1.msra.mxu0 %v1252
        %1313 = vmatprep.subr.mxu0 0.0
        %1314 = vmatpush1.msra.mxu0 %v1251
        %1315 = vmatprep.subr.mxu0 0.0
        %1316 = vmatpush1.msra.mxu0 %v1250
        %1317 = vmatprep.subr.mxu0 0.0
        %1318 = vmatpush2.msra.mxu0 %v1281
        %1319 = vmatprep.subr.mxu0 0.0
        %1320 = vmatpush2.msra.mxu0 %v1280
        %1321 = vmatprep.subr.mxu0 0.0
        %1322 = vmatpush2.msra.mxu0 %v1279
        %1323 = vmatprep.subr.mxu0 0.0
        %1324 = vmatpush2.msra.mxu0 %v1278
        %1325 = vmatprep.subr.mxu0 0.0
        %1326 = vmatpush2.msra.mxu0 %v1277
        %1327 = vmatprep.subr.mxu0 0.0
        %1328 = vmatpush2.msra.mxu0 %v1276
        %1329 = vmatprep.subr.mxu0 0.0
        %1330 = vmatpush2.msra.mxu0 %v1275
        %1331 = vmatprep.subr.mxu0 0.0
        %1332 = vmatpush2.msra.mxu0 %v1274
        %1333 = vmatprep.subr.mxu0 0.0
        %1334 = vmatpush2.msra.mxu0 %v1273
        %1335 = vmatprep.subr.mxu0 0.0
        %1336 = vmatpush2.msra.mxu0 %v1272
        %1337 = vmatprep.subr.mxu0 0.0
        %1338 = vmatpush2.msra.mxu0 %v1271
        %1339 = vmatprep.subr.mxu0 0.0
        %1340 = vmatpush2.msra.mxu0 %v1270
        %1341 = vmatprep.subr.mxu0 0.0
        %1342 = vmatpush2.msra.mxu0 %v1269
        %1343 = vmatprep.subr.mxu0 0.0
        %1344 = vmatpush2.msra.mxu0 %v1268
        %1345 = vmatprep.subr.mxu0 0.0
        %1346 = vmatpush2.msra.mxu0 %v1267
        %1347 = vmatprep.subr.mxu0 0.0
        %1348 = vmatpush2.msra.mxu0 %v1266
        %1349 = vmatprep.mubr.f32.mxu0 %v1283
        %1350 = vmatmul.mubr.f32.gmra.mxu0 %v1248
        %v1351 = vpop.f32.mrf.mxu0
        %v1352 = vadd.f32 0.0, %v1351
        %v1353 = vpop.f32.mrf.mxu0
        %1354 = vdwg.mxu0
        %v1355 = vadd.f32 %v1233, %v1352
        %v1356 = vld [vmem:[%s260] sm:$0xf]
        %1358 = vset.pattern.permute.xlu0 0
        %1359 = vperm.xlu0 %1358, %v1356
        %v1360 = vpop.permute.xlu0 %1359
        %v1362 = vadd.f32 %v1355, %v1360
        %v1363 = vmax.f32 %v1362, 0.0
        %vm1364 = vcmask 519168
        %1365 = vst.msk [vmem:[%s242] sm:$0xf] %vm1364, %v1363
        %s1366 = sand.u32 %s141, 1
        %s1367 = scalar_lea.sflag [#allocation3], %s1366
        %s1368 = sand.u32 %s141, 1
        %s1369 = smul.addr %s1368, 4
        %s1370 = scalar_lea.vmem [#allocation2], %s1369
        // Predicated region
        $region37: #{tpu_custom_call.1} parent=35 // pred_check
          %p1371 = pneg %p151
        $region38: #{tpu_custom_call.1} parent=35 // pred_check_branch
          %1373 = sbr.rel (%p1371) target = $region40
        $region39: #{tpu_custom_call.1} parent=35 // pred_region
          %s1375 = ssub.s32 64, 64
          %1376 = vsyncadd %s1367, %s1375
          %s1377 = sadd.s32 %s23, %s22
          %s1378 = smul.addr %s1377, 64
          %s1379 = scalar_lea.hbm %s4, %s1378
          %s1381 = sshll.u32 %s1370, 4
          %s1382 = int_to_ptr.vmem [resolvable:$true] %s1381
          %1384 = dma.vmem_to_hbm [thread:$0]  %s1382, 64, %s1379, %s1367
        $region40: #{tpu_custom_call.1} parent=35 // pred_fallthru
          _
      $region36: #{tpu_custom_call.1} parent=5 // pred_fallthru
        _
      %p1385 = scmp.le.s32.totalorder 2, %s13
      // Predicated region
      $region41: #{tpu_custom_call.1} parent=5 // pred_check
        %p1386 = pneg %p1385
      $region42: #{tpu_custom_call.1} parent=5 // pred_check_branch
        %1388 = sbr.rel (%p1386) target = $region44
      $region43: #{tpu_custom_call.1} parent=5 // pred_region
        %s1389 = ssub.s32 %s13, 2
        // Predicated region
        $region45: #{tpu_custom_call.1} parent=43 // pred_check
          %p1390 = pneg %p157
        $region46: #{tpu_custom_call.1} parent=43 // pred_check_branch
          %1392 = sbr.rel (%p1390) target = $region48
        $region47: #{tpu_custom_call.1} parent=43 // pred_region
          %s1393 = sand.u32 %s142, 1
          %s1394 = scalar_lea.sflag [#allocation3], %s1393
          %s1395 = sand.u32 %s142, 1
          %s1396 = smul.addr %s1395, 4
          %s1397 = scalar_lea.vmem [#allocation2], %s1396
          %1398 = dma.done %s1394, 64
        $region48: #{tpu_custom_call.1} parent=43 // pred_fallthru
          _
      $region44: #{tpu_custom_call.1} parent=5 // pred_fallthru
        _
    $region6: #{tpu_custom_call.1} parent=1 // loop_footer
      %s17 = sadd.s32 1, %s13
    $region7: #{tpu_custom_call.1} parent=1 // loop_footer_branch
      %12 = sbr.rel target = $region3
    $region8: #{tpu_custom_call.1} parent=1 // loop_exit
      _
    %1399 = vsyncpa [#allocation3], 1
    %s1400 = scalar_lea.sflag [#allocation3], 1
    %1401 = vsyncpa %s1400, 1

</llo_original>
